<compile_context>
chip_gen: v7x
topology: tpu7x:2x2x1
jax: 0.10.0
libtpu: 0.0.40
codegen_flags: <defaults>
</compile_context>

<pallas_src>
import functools
import numpy as np
import jax
import jax.numpy as jnp
from jax.experimental import pallas as pl
from jax.experimental.pallas import tpu as pltpu


# ---------------------------------------------------------------------------
# relative_position_index (host-side, numpy) -- identical semantics to the
# PyTorch helper.
# ---------------------------------------------------------------------------
def relative_position_index(dims):
    coords = np.stack(np.meshgrid(*[np.arange(d) for d in dims], indexing="ij"))
    coords = coords.reshape(len(dims), -1)                      # (D, V)
    rel = coords[:, :, None] - coords[:, None, :]               # (D, V, V)
    rel = np.transpose(rel, (1, 2, 0)).astype(np.int64).copy()  # (V, V, D)
    for i, d in enumerate(dims):
        rel[:, :, i] += d - 1
    s = 1
    for i, d in enumerate(reversed(dims), 1):
        rel[:, :, -i] *= s
        s *= 2 * d - 1
    return rel.sum(-1)                                          # (V, V)


# ---------------------------------------------------------------------------
# Pallas kernel: one block of B windows per grid step.
# ---------------------------------------------------------------------------
def window_attention_kernel(*refs, num_head, head_dim, scale, has_mask, mxu_dtype):
    if has_mask:
        x_ref, w_ref, bias_ref, mask_ref, o_ref, qkv_scr, o_scr = refs
    else:
        x_ref, w_ref, bias_ref, o_ref, qkv_scr, o_scr = refs
        mask_ref = None

    B, V, C = x_ref.shape
    hd = head_dim

    # One fused QKV projection for all B windows: (B*V, C) @ (C, 3C) on the MXU.
    # Result goes to VMEM scratch so the unrolled head loop slices a ref rather
    # than keeping the whole (B, V, 3C) value live in vregs.
    x2 = x_ref[...].reshape(B * V, C)
    qkv_scr[...] = jnp.dot(
        x2, w_ref[...], preferred_element_type=jnp.float32
    ).reshape(B, V, 3 * C)

    mask = mask_ref[...].astype(jnp.float32) if has_mask else None

    for h in range(num_head):                      # static unroll over heads
        # q is scaled in f32 here (same order as the PyTorch reference).
        qh = qkv_scr[:, :, h * hd:(h + 1) * hd] * scale                 # (B,V,hd)
        kh = qkv_scr[:, :, C + h * hd:C + (h + 1) * hd]                 # (B,V,hd)
        vh = qkv_scr[:, :, 2 * C + h * hd:2 * C + (h + 1) * hd]         # (B,V,hd)

        if mxu_dtype is not None:
            qh = qh.astype(mxu_dtype)
            kh = kh.astype(mxu_dtype)

        # Batched over windows; contraction over hd, no explicit kh.T transpose.
        s = jnp.einsum("bqd,bkd->bqk", qh, kh,
                       preferred_element_type=jnp.float32)              # (B,V,V)
        s = s + bias_ref[h][None]
        if has_mask:
            s = s + mask

        # Numerically stable softmax with an exact divide (accuracy fix).
        s = s - jnp.max(s, axis=-1, keepdims=True)
        e = jnp.exp(s)
        a = e / jnp.sum(e, axis=-1, keepdims=True)

        if mxu_dtype is not None:
            a = a.astype(mxu_dtype)
            vh = vh.astype(mxu_dtype)

        # Retire this head immediately into the f32 output scratch.
        o_scr[:, :, h * hd:(h + 1) * hd] = jnp.einsum(
            "bqk,bkd->bqd", a, vh, preferred_element_type=jnp.float32)

    # Single full-width store of the pipelined output block.
    o_ref[...] = o_scr[...].astype(o_ref.dtype)


# ---------------------------------------------------------------------------
# VMEM-budget-driven block sizing.
# ---------------------------------------------------------------------------
def _pick_windows_per_block(num_windows, V, C, H, *, x_bytes, out_bytes,
                            mask_bytes, has_mask, vmem_budget_bytes):
    """Largest per-step window block whose working set fits the VMEM budget."""
    resident = 2 * (C * 3 * C) * x_bytes + 2 * (H * V * V) * 4   # weight + bias (2x buffered)
    budget = max(vmem_budget_bytes - resident, 0)

    def live_bytes(b):
        n = 2 * b * V * C * x_bytes            # x block, double-buffered
        n += 2 * b * V * C * out_bytes         # output block, double-buffered
        if has_mask:
            n += 2 * b * V * V * mask_bytes    # mask block, double-buffered
        n += b * V * 3 * C * 4                 # qkv f32 scratch
        n += b * V * C * 4                     # per-head output f32 scratch
        n += 3 * b * V * V * 4                 # s / e / a temporaries
        return n

    best = 1
    for cand in range(1, 1025):
        if live_bytes(cand) <= budget:
            best = cand
        else:
            break
    return max(1, min(best, num_windows))


# ---------------------------------------------------------------------------
# Wrapper
# ---------------------------------------------------------------------------
def window_attention(x, w_qkv, rel_pos_bias, rel_pos_index, mask, *,
                     num_head, windows_per_block=None, mxu_dtype=None,
                     vmem_budget_bytes=24 << 20, vmem_limit_bytes=48 << 20):
    N, V, C = x.shape
    assert C % num_head == 0
    head_dim = C // num_head
    scale = head_dim ** (-0.5)
    has_mask = mask is not None

    # Host-side glue: gather the (H, V, V) relative-position bias table and
    # transpose the PyTorch (3C, C) weight so the kernel computes x @ W.T.
    bias = rel_pos_bias[:, rel_pos_index].astype(jnp.float32)            # (H, V, V)
    w_t = w_qkv.T                                                        # (C, 3C)

    x_in = x if mxu_dtype is None else x.astype(mxu_dtype)
    w_in = w_t if mxu_dtype is None else w_t.astype(mxu_dtype)
    x_bytes = jnp.dtype(x_in.dtype).itemsize
    out_bytes = jnp.dtype(x.dtype).itemsize
    mask_bytes = 2                      # mask streamed as bf16 (only 0 / -inf)

    if windows_per_block is None:
        B = _pick_windows_per_block(N, V, C, num_head, x_bytes=x_bytes,
                                    out_bytes=out_bytes, mask_bytes=mask_bytes,
                                    has_mask=has_mask,
                                    vmem_budget_bytes=vmem_budget_bytes)
        if N >= 2:                      # keep >=2 grid steps -> both v7x TCs busy
            B = min(B, pl.cdiv(N, 2))
    else:
        B = min(windows_per_block, N)
    B = max(1, B)

    grid_n = pl.cdiv(N, B)
    n_pad = grid_n * B - N
    if n_pad:
        x_in = jnp.pad(x_in, ((0, n_pad), (0, 0), (0, 0)))

    in_specs = [
        pl.BlockSpec((B, V, C), lambda n: (n, 0, 0)),            # x: B windows
        pl.BlockSpec((C, 3 * C), lambda n: (0, 0)),              # qkv weight (resident)
        pl.BlockSpec((num_head, V, V), lambda n: (0, 0, 0)),     # rel-pos bias (resident)
    ]
    inputs = [x_in, w_in, bias]
    if has_mask:
        m = mask.astype(jnp.bfloat16)
        if n_pad:
            m = jnp.pad(m, ((0, n_pad), (0, 0), (0, 0)))
        in_specs.append(pl.BlockSpec((B, V, V), lambda n: (n, 0, 0)))
        inputs.append(m)

    kernel = functools.partial(window_attention_kernel, num_head=num_head,
                               head_dim=head_dim, scale=scale,
                               has_mask=has_mask, mxu_dtype=mxu_dtype)

    out = pl.pallas_call(
        kernel,
        out_shape=jax.ShapeDtypeStruct((grid_n * B, V, C), x.dtype),
        grid=(grid_n,),
        in_specs=in_specs,
        out_specs=pl.BlockSpec((B, V, C), lambda n: (n, 0, 0)),
        scratch_shapes=[pltpu.VMEM((B, V, 3 * C), jnp.float32),
                        pltpu.VMEM((B, V, C), jnp.float32)],
        compiler_params=pltpu.CompilerParams(
            dimension_semantics=("parallel",),
            vmem_limit_bytes=vmem_limit_bytes),
    )(*inputs)
    return out[:N] if n_pad else out


# ---------------------------------------------------------------------------
# Pure-JAX reference (mirrors the PyTorch forward) for verification
# ---------------------------------------------------------------------------
def window_attention_ref(x, w_qkv, rel_pos_bias, rel_pos_index, mask, *, num_head):
    N, V, C = x.shape
    hd = C // num_head
    scale = hd ** (-0.5)
    qkv = x @ w_qkv.T                                            # (N, V, 3C)
    qkv = qkv.reshape(N, V, 3, num_head, hd).transpose(2, 0, 3, 1, 4)  # k n h v c
    q, k, v = qkv[0] * scale, qkv[1], qkv[2]
    p = jnp.einsum("nhqc,nhkc->nhqk", q, k)
    p = p + rel_pos_bias[:, rel_pos_index][None]
    if mask is not None:
        p = p + mask[:, None]
    a = jax.nn.softmax(p, axis=-1)
    o = jnp.einsum("nhqk,nhkc->nhqc", a, v)
    return o.transpose(0, 2, 1, 3).reshape(N, V, C)


if __name__ == "__main__":
    # Module options: num_dim=2, window_size=4, num_channel=32, num_head=4
    num_dim, window_size, C, H = 2, 4, 32, 4
    V = window_size ** num_dim            # 16 voxels per window

    key = jax.random.PRNGKey(0)
    kx, kw, kb = jax.random.split(key, 3)

    N = 2
    x = jax.random.normal(kx, (N, V, C), dtype=jnp.float32)
    # nn.Linear(C, 3C, bias=False) weight, shape (3C, C)
    w_qkv = jax.random.normal(kw, (3 * C, C), dtype=jnp.float32) * (C ** -0.5)
    # relative_position_bias: (H, (2w-1)^d), trunc_normal(std=0.02) ~ normal*0.02
    rel_pos_bias = jax.random.normal(kb, (H, (2 * window_size - 1) ** num_dim),
                                     dtype=jnp.float32) * 0.02
    rel_pos_index = jnp.asarray(relative_position_index([window_size] * num_dim),
                                dtype=jnp.int32)

    # masks: 0 where positions attend to each other, large-negative otherwise
    ii = jnp.arange(V)
    block8 = jnp.where((ii[:, None] // 8) == (ii[None, :] // 8), 0.0, -1e9)
    block4 = jnp.where((ii[:, None] // 4) == (ii[None, :] // 4), 0.0, -1e9)
    mask = jnp.stack([jnp.zeros((V, V)), block8]).astype(jnp.float32)   # (N, V, V)

    # Tolerance covers XLA's default reduced-precision f32 matmul passes on TPU
    # (the kernel math itself is exact f32 softmax + f32 accumulation).
    tol = dict(rtol=5e-3, atol=5e-3)
    args = (x, w_qkv, rel_pos_bias, rel_pos_index)

    # 1) f32 path, with mask
    out = jax.block_until_ready(window_attention(*args, mask, num_head=H))
    ref = window_attention_ref(*args, mask, num_head=H)
    np.testing.assert_allclose(np.asarray(out), np.asarray(ref), **tol)

    # 2) f32 path, no mask (mask add + input statically compiled out)
    out_nm = jax.block_until_ready(window_attention(*args, None, num_head=H))
    ref_nm = window_attention_ref(*args, None, num_head=H)
    np.testing.assert_allclose(np.asarray(out_nm), np.asarray(ref_nm), **tol)

    # 3) window count not divisible by the block size (cdiv grid + pad + slice)
    N3 = 3
    x3 = jax.random.normal(jax.random.PRNGKey(1), (N3, V, C), dtype=jnp.float32)
    mask3 = jnp.stack([jnp.zeros((V, V)), block8, block4]).astype(jnp.float32)
    out3 = jax.block_until_ready(
        window_attention(x3, w_qkv, rel_pos_bias, rel_pos_index, mask3,
                         num_head=H, windows_per_block=2))
    ref3 = window_attention_ref(x3, w_qkv, rel_pos_bias, rel_pos_index, mask3,
                                num_head=H)
    np.testing.assert_allclose(np.asarray(out3), np.asarray(ref3), **tol)

    # 4) bf16 MXU-input path (recommended default on v6e/v7x); f32 softmax and
    #    accumulation, so only input-rounding error -> looser tolerance.
    out_bf = jax.block_until_ready(
        window_attention(*args, mask, num_head=H, mxu_dtype=jnp.bfloat16))
    np.testing.assert_allclose(np.asarray(out_bf), np.asarray(ref),
                               rtol=5e-2, atol=5e-2)

    print("KERNEL_OK")
</pallas_src>

<mosaic_0001>
module attributes {stable_mosaic.version = 11 : i64} {
  func.func @window_attention_kernel(%arg0: i32, %arg1: memref<1x16x32xf32, #tpu.memory_space<vmem>>, %arg2: memref<32x96xf32, #tpu.memory_space<vmem>>, %arg3: memref<4x16x16xf32, #tpu.memory_space<vmem>>, %arg4: memref<1x16x16xbf16, #tpu.memory_space<vmem>>, %arg5: memref<1x16x32xf32, #tpu.memory_space<vmem>>, %arg6: memref<1x16x96xf32, #tpu.memory_space<vmem>>, %arg7: memref<1x16x32xf32, #tpu.memory_space<vmem>>) attributes {dimension_semantics = [#tpu.dimension_semantics<parallel>], iteration_bounds = array<i64: 2>, scalar_prefetch = 0 : i64, scratch_operands = 2 : i64, tpu.core_type = #tpu.core_type<tc>, window_params = [{transform_indices = @transform_0, window_bounds = array<i64: 1, 16, 32>}, {pipeline_mode = #tpu.pipeline_mode<synchronous>, transform_indices = @transform_1, window_bounds = array<i64: 32, 96>}, {pipeline_mode = #tpu.pipeline_mode<synchronous>, transform_indices = @transform_2, window_bounds = array<i64: 4, 16, 16>}, {transform_indices = @transform_3, window_bounds = array<i64: 1, 16, 16>}, {transform_indices = @transform_4, window_bounds = array<i64: 1, 16, 32>}]} {
    %c0 = arith.constant 0 : index
    %c0_0 = arith.constant 0 : index
    %c0_1 = arith.constant 0 : index
    %0 = vector.load %arg1[%c0, %c0_0, %c0_1] : memref<1x16x32xf32, #tpu.memory_space<vmem>>, vector<1x16x32xf32>
    %1 = vector.shape_cast %0 : vector<1x16x32xf32> to vector<16x32xf32>
    %c0_2 = arith.constant 0 : index
    %c0_3 = arith.constant 0 : index
    %2 = vector.load %arg2[%c0_2, %c0_3] : memref<32x96xf32, #tpu.memory_space<vmem>>, vector<32x96xf32>
    %cst = arith.constant dense<0.000000e+00> : vector<16x96xf32>
    %3 = tpu.matmul %1, %2, %cst {dimension_numbers = #tpu.dot_dimension_numbers<[1], [0], [0], [1], [0, 0, 1, 1], [], []>} : vector<16x32xf32>, vector<32x96xf32>, vector<16x96xf32> -> vector<16x96xf32>
    %4 = vector.shape_cast %3 : vector<16x96xf32> to vector<1x16x96xf32>
    %c0_4 = arith.constant 0 : index
    %c0_5 = arith.constant 0 : index
    %c0_6 = arith.constant 0 : index
    %5 = vector.load %arg6[%c0_4, %c0_5, %c0_6] : memref<1x16x96xf32, #tpu.memory_space<vmem>>, vector<1x16x96xf32>
    tpu.vector_store %arg6[%c0_4, %c0_5, %c0_6], %4 {strides = array<i32>} : memref<1x16x96xf32, #tpu.memory_space<vmem>>, vector<1x16x96xf32>,
    %c0_7 = arith.constant 0 : index
    %c0_8 = arith.constant 0 : index
    %c0_9 = arith.constant 0 : index
    %6 = vector.load %arg4[%c0_7, %c0_8, %c0_9] : memref<1x16x16xbf16, #tpu.memory_space<vmem>>, vector<1x16x16xbf16>
    %7 = arith.extf %6 : vector<1x16x16xbf16> to vector<1x16x16xf32>
    %c0_10 = arith.constant 0 : index
    %c0_11 = arith.constant 0 : index
    %c0_12 = arith.constant 0 : index
    %8 = vector.load %arg6[%c0_10, %c0_11, %c0_12] : memref<1x16x96xf32, #tpu.memory_space<vmem>>, vector<1x16x8xf32>
    %cst_13 = arith.constant 0.353553385 : f32
    %9 = vector.broadcast %cst_13 : f32 to vector<1x16x8xf32>
    %10 = arith.mulf %8, %9 : vector<1x16x8xf32>
    %c0_14 = arith.constant 0 : index
    %c0_15 = arith.constant 0 : index
    %c32 = arith.constant 32 : index
    %11 = vector.load %arg6[%c0_14, %c0_15, %c32] : memref<1x16x96xf32, #tpu.memory_space<vmem>>, vector<1x16x8xf32>
    %c0_16 = arith.constant 0 : index
    %c0_17 = arith.constant 0 : index
    %c64 = arith.constant 64 : index
    %12 = vector.load %arg6[%c0_16, %c0_17, %c64] : memref<1x16x96xf32, #tpu.memory_space<vmem>>, vector<1x16x8xf32>
    "tpu.trace_start"() <{level = 10 : i32, message = "bqd,bkd->bqk"}> : () -> ()
    %cst_18 = arith.constant dense<0.000000e+00> : vector<1x16x16xf32>
    %13 = tpu.matmul %10, %11, %cst_18 {dimension_numbers = #tpu.dot_dimension_numbers<[2], [2], [1], [1], [0, 0, 0, 1, 1, 1], [0], [0]>} : vector<1x16x8xf32>, vector<1x16x8xf32>, vector<1x16x16xf32> -> vector<1x16x16xf32>
    "tpu.trace_stop"() : () -> ()
    %c0_19 = arith.constant 0 : index
    %c0_20 = arith.constant 0 : index
    %c0_21 = arith.constant 0 : index
    %14 = vector.load %arg3[%c0_19, %c0_20, %c0_21] : memref<4x16x16xf32, #tpu.memory_space<vmem>>, vector<1x16x16xf32>
    %15 = vector.shape_cast %14 : vector<1x16x16xf32> to vector<16x16xf32>
    %16 = vector.shape_cast %15 : vector<16x16xf32> to vector<1x16x16xf32>
    %17 = arith.addf %13, %16 : vector<1x16x16xf32>
    %18 = arith.addf %17, %7 : vector<1x16x16xf32>
    %cst_22 = arith.constant dense<0xFF800000> : vector<1x16xf32>
    %19 = vector.multi_reduction <maximumf>, %18, %cst_22 [2] : vector<1x16x16xf32> to vector<1x16xf32>
    %20 = vector.shape_cast %19 : vector<1x16xf32> to vector<1x16x1xf32>
    %21 = vector.broadcast %20 : vector<1x16x1xf32> to vector<1x16x16xf32>
    %22 = arith.subf %18, %21 : vector<1x16x16xf32>
    %23 = math.exp %22 : vector<1x16x16xf32>
    %cst_23 = arith.constant dense<0.000000e+00> : vector<1x16xf32>
    %24 = vector.multi_reduction <add>, %23, %cst_23 [2] : vector<1x16x16xf32> to vector<1x16xf32>
    %25 = vector.shape_cast %24 : vector<1x16xf32> to vector<1x16x1xf32>
    %26 = vector.broadcast %25 : vector<1x16x1xf32> to vector<1x16x16xf32>
    %27 = arith.divf %23, %26 : vector<1x16x16xf32>
    "tpu.trace_start"() <{level = 10 : i32, message = "bqk,bkd->bqd"}> : () -> ()
    %cst_24 = arith.constant dense<0.000000e+00> : vector<1x16x8xf32>
    %28 = tpu.matmul %27, %12, %cst_24 {dimension_numbers = #tpu.dot_dimension_numbers<[2], [1], [1], [2], [0, 0, 0, 1, 1, 2], [0], [0]>} : vector<1x16x16xf32>, vector<1x16x8xf32>, vector<1x16x8xf32> -> vector<1x16x8xf32>
    "tpu.trace_stop"() : () -> ()
    %c0_25 = arith.constant 0 : index
    %c0_26 = arith.constant 0 : index
    %c0_27 = arith.constant 0 : index
    %29 = vector.load %arg7[%c0_25, %c0_26, %c0_27] : memref<1x16x32xf32, #tpu.memory_space<vmem>>, vector<1x16x8xf32>
    tpu.vector_store %arg7[%c0_25, %c0_26, %c0_27], %28 {strides = array<i32>} : memref<1x16x32xf32, #tpu.memory_space<vmem>>, vector<1x16x8xf32>,
    %c0_28 = arith.constant 0 : index
    %c0_29 = arith.constant 0 : index
    %c8 = arith.constant 8 : index
    %30 = vector.load %arg6[%c0_28, %c0_29, %c8] : memref<1x16x96xf32, #tpu.memory_space<vmem>>, vector<1x16x8xf32>
    %cst_30 = arith.constant 0.353553385 : f32
    %31 = vector.broadcast %cst_30 : f32 to vector<1x16x8xf32>
    %32 = arith.mulf %30, %31 : vector<1x16x8xf32>
    %c0_31 = arith.constant 0 : index
    %c0_32 = arith.constant 0 : index
    %c40 = arith.constant 40 : index
    %33 = vector.load %arg6[%c0_31, %c0_32, %c40] : memref<1x16x96xf32, #tpu.memory_space<vmem>>, vector<1x16x8xf32>
    %c0_33 = arith.constant 0 : index
    %c0_34 = arith.constant 0 : index
    %c72 = arith.constant 72 : index
    %34 = vector.load %arg6[%c0_33, %c0_34, %c72] : memref<1x16x96xf32, #tpu.memory_space<vmem>>, vector<1x16x8xf32>
    "tpu.trace_start"() <{level = 10 : i32, message = "bqd,bkd->bqk"}> : () -> ()
    %cst_35 = arith.constant dense<0.000000e+00> : vector<1x16x16xf32>
    %35 = tpu.matmul %32, %33, %cst_35 {dimension_numbers = #tpu.dot_dimension_numbers<[2], [2], [1], [1], [0, 0, 0, 1, 1, 1], [0], [0]>} : vector<1x16x8xf32>, vector<1x16x8xf32>, vector<1x16x16xf32> -> vector<1x16x16xf32>
    "tpu.trace_stop"() : () -> ()
    %c1 = arith.constant 1 : index
    %c0_36 = arith.constant 0 : index
    %c0_37 = arith.constant 0 : index
    %36 = vector.load %arg3[%c1, %c0_36, %c0_37] : memref<4x16x16xf32, #tpu.memory_space<vmem>>, vector<1x16x16xf32>
    %37 = vector.shape_cast %36 : vector<1x16x16xf32> to vector<16x16xf32>
    %38 = vector.shape_cast %37 : vector<16x16xf32> to vector<1x16x16xf32>
    %39 = arith.addf %35, %38 : vector<1x16x16xf32>
    %40 = arith.addf %39, %7 : vector<1x16x16xf32>
    %cst_38 = arith.constant dense<0xFF800000> : vector<1x16xf32>
    %41 = vector.multi_reduction <maximumf>, %40, %cst_38 [2] : vector<1x16x16xf32> to vector<1x16xf32>
    %42 = vector.shape_cast %41 : vector<1x16xf32> to vector<1x16x1xf32>
    %43 = vector.broadcast %42 : vector<1x16x1xf32> to vector<1x16x16xf32>
    %44 = arith.subf %40, %43 : vector<1x16x16xf32>
    %45 = math.exp %44 : vector<1x16x16xf32>
    %cst_39 = arith.constant dense<0.000000e+00> : vector<1x16xf32>
    %46 = vector.multi_reduction <add>, %45, %cst_39 [2] : vector<1x16x16xf32> to vector<1x16xf32>
    %47 = vector.shape_cast %46 : vector<1x16xf32> to vector<1x16x1xf32>
    %48 = vector.broadcast %47 : vector<1x16x1xf32> to vector<1x16x16xf32>
    %49 = arith.divf %45, %48 : vector<1x16x16xf32>
    "tpu.trace_start"() <{level = 10 : i32, message = "bqk,bkd->bqd"}> : () -> ()
    %cst_40 = arith.constant dense<0.000000e+00> : vector<1x16x8xf32>
    %50 = tpu.matmul %49, %34, %cst_40 {dimension_numbers = #tpu.dot_dimension_numbers<[2], [1], [1], [2], [0, 0, 0, 1, 1, 2], [0], [0]>} : vector<1x16x16xf32>, vector<1x16x8xf32>, vector<1x16x8xf32> -> vector<1x16x8xf32>
    "tpu.trace_stop"() : () -> ()
    %c0_41 = arith.constant 0 : index
    %c0_42 = arith.constant 0 : index
    %c8_43 = arith.constant 8 : index
    %51 = vector.load %arg7[%c0_41, %c0_42, %c8_43] : memref<1x16x32xf32, #tpu.memory_space<vmem>>, vector<1x16x8xf32>
    tpu.vector_store %arg7[%c0_41, %c0_42, %c8_43], %50 {strides = array<i32>} : memref<1x16x32xf32, #tpu.memory_space<vmem>>, vector<1x16x8xf32>,
    %c0_44 = arith.constant 0 : index
    %c0_45 = arith.constant 0 : index
    %c16 = arith.constant 16 : index
    %52 = vector.load %arg6[%c0_44, %c0_45, %c16] : memref<1x16x96xf32, #tpu.memory_space<vmem>>, vector<1x16x8xf32>
    %cst_46 = arith.constant 0.353553385 : f32
    %53 = vector.broadcast %cst_46 : f32 to vector<1x16x8xf32>
    %54 = arith.mulf %52, %53 : vector<1x16x8xf32>
    %c0_47 = arith.constant 0 : index
    %c0_48 = arith.constant 0 : index
    %c48 = arith.constant 48 : index
    %55 = vector.load %arg6[%c0_47, %c0_48, %c48] : memref<1x16x96xf32, #tpu.memory_space<vmem>>, vector<1x16x8xf32>
    %c0_49 = arith.constant 0 : index
    %c0_50 = arith.constant 0 : index
    %c80 = arith.constant 80 : index
    %56 = vector.load %arg6[%c0_49, %c0_50, %c80] : memref<1x16x96xf32, #tpu.memory_space<vmem>>, vector<1x16x8xf32>
    "tpu.trace_start"() <{level = 10 : i32, message = "bqd,bkd->bqk"}> : () -> ()
    %cst_51 = arith.constant dense<0.000000e+00> : vector<1x16x16xf32>
    %57 = tpu.matmul %54, %55, %cst_51 {dimension_numbers = #tpu.dot_dimension_numbers<[2], [2], [1], [1], [0, 0, 0, 1, 1, 1], [0], [0]>} : vector<1x16x8xf32>, vector<1x16x8xf32>, vector<1x16x16xf32> -> vector<1x16x16xf32>
    "tpu.trace_stop"() : () -> ()
    %c2 = arith.constant 2 : index
    %c0_52 = arith.constant 0 : index
    %c0_53 = arith.constant 0 : index
    %58 = vector.load %arg3[%c2, %c0_52, %c0_53] : memref<4x16x16xf32, #tpu.memory_space<vmem>>, vector<1x16x16xf32>
    %59 = vector.shape_cast %58 : vector<1x16x16xf32> to vector<16x16xf32>
    %60 = vector.shape_cast %59 : vector<16x16xf32> to vector<1x16x16xf32>
    %61 = arith.addf %57, %60 : vector<1x16x16xf32>
    %62 = arith.addf %61, %7 : vector<1x16x16xf32>
    %cst_54 = arith.constant dense<0xFF800000> : vector<1x16xf32>
    %63 = vector.multi_reduction <maximumf>, %62, %cst_54 [2] : vector<1x16x16xf32> to vector<1x16xf32>
    %64 = vector.shape_cast %63 : vector<1x16xf32> to vector<1x16x1xf32>
    %65 = vector.broadcast %64 : vector<1x16x1xf32> to vector<1x16x16xf32>
    %66 = arith.subf %62, %65 : vector<1x16x16xf32>
    %67 = math.exp %66 : vector<1x16x16xf32>
    %cst_55 = arith.constant dense<0.000000e+00> : vector<1x16xf32>
    %68 = vector.multi_reduction <add>, %67, %cst_55 [2] : vector<1x16x16xf32> to vector<1x16xf32>
    %69 = vector.shape_cast %68 : vector<1x16xf32> to vector<1x16x1xf32>
    %70 = vector.broadcast %69 : vector<1x16x1xf32> to vector<1x16x16xf32>
    %71 = arith.divf %67, %70 : vector<1x16x16xf32>
    "tpu.trace_start"() <{level = 10 : i32, message = "bqk,bkd->bqd"}> : () -> ()
    %cst_56 = arith.constant dense<0.000000e+00> : vector<1x16x8xf32>
    %72 = tpu.matmul %71, %56, %cst_56 {dimension_numbers = #tpu.dot_dimension_numbers<[2], [1], [1], [2], [0, 0, 0, 1, 1, 2], [0], [0]>} : vector<1x16x16xf32>, vector<1x16x8xf32>, vector<1x16x8xf32> -> vector<1x16x8xf32>
    "tpu.trace_stop"() : () -> ()
    %c0_57 = arith.constant 0 : index
    %c0_58 = arith.constant 0 : index
    %c16_59 = arith.constant 16 : index
    %73 = vector.load %arg7[%c0_57, %c0_58, %c16_59] : memref<1x16x32xf32, #tpu.memory_space<vmem>>, vector<1x16x8xf32>
    tpu.vector_store %arg7[%c0_57, %c0_58, %c16_59], %72 {strides = array<i32>} : memref<1x16x32xf32, #tpu.memory_space<vmem>>, vector<1x16x8xf32>,
    %c0_60 = arith.constant 0 : index
    %c0_61 = arith.constant 0 : index
    %c24 = arith.constant 24 : index
    %74 = vector.load %arg6[%c0_60, %c0_61, %c24] : memref<1x16x96xf32, #tpu.memory_space<vmem>>, vector<1x16x8xf32>
    %cst_62 = arith.constant 0.353553385 : f32
    %75 = vector.broadcast %cst_62 : f32 to vector<1x16x8xf32>
    %76 = arith.mulf %74, %75 : vector<1x16x8xf32>
    %c0_63 = arith.constant 0 : index
    %c0_64 = arith.constant 0 : index
    %c56 = arith.constant 56 : index
    %77 = vector.load %arg6[%c0_63, %c0_64, %c56] : memref<1x16x96xf32, #tpu.memory_space<vmem>>, vector<1x16x8xf32>
    %c0_65 = arith.constant 0 : index
    %c0_66 = arith.constant 0 : index
    %c88 = arith.constant 88 : index
    %78 = vector.load %arg6[%c0_65, %c0_66, %c88] : memref<1x16x96xf32, #tpu.memory_space<vmem>>, vector<1x16x8xf32>
    "tpu.trace_start"() <{level = 10 : i32, message = "bqd,bkd->bqk"}> : () -> ()
    %cst_67 = arith.constant dense<0.000000e+00> : vector<1x16x16xf32>
    %79 = tpu.matmul %76, %77, %cst_67 {dimension_numbers = #tpu.dot_dimension_numbers<[2], [2], [1], [1], [0, 0, 0, 1, 1, 1], [0], [0]>} : vector<1x16x8xf32>, vector<1x16x8xf32>, vector<1x16x16xf32> -> vector<1x16x16xf32>
    "tpu.trace_stop"() : () -> ()
    %c3 = arith.constant 3 : index
    %c0_68 = arith.constant 0 : index
    %c0_69 = arith.constant 0 : index
    %80 = vector.load %arg3[%c3, %c0_68, %c0_69] : memref<4x16x16xf32, #tpu.memory_space<vmem>>, vector<1x16x16xf32>
    %81 = vector.shape_cast %80 : vector<1x16x16xf32> to vector<16x16xf32>
    %82 = vector.shape_cast %81 : vector<16x16xf32> to vector<1x16x16xf32>
    %83 = arith.addf %79, %82 : vector<1x16x16xf32>
    %84 = arith.addf %83, %7 : vector<1x16x16xf32>
    %cst_70 = arith.constant dense<0xFF800000> : vector<1x16xf32>
    %85 = vector.multi_reduction <maximumf>, %84, %cst_70 [2] : vector<1x16x16xf32> to vector<1x16xf32>
    %86 = vector.shape_cast %85 : vector<1x16xf32> to vector<1x16x1xf32>
    %87 = vector.broadcast %86 : vector<1x16x1xf32> to vector<1x16x16xf32>
    %88 = arith.subf %84, %87 : vector<1x16x16xf32>
    %89 = math.exp %88 : vector<1x16x16xf32>
    %cst_71 = arith.constant dense<0.000000e+00> : vector<1x16xf32>
    %90 = vector.multi_reduction <add>, %89, %cst_71 [2] : vector<1x16x16xf32> to vector<1x16xf32>
    %91 = vector.shape_cast %90 : vector<1x16xf32> to vector<1x16x1xf32>
    %92 = vector.broadcast %91 : vector<1x16x1xf32> to vector<1x16x16xf32>
    %93 = arith.divf %89, %92 : vector<1x16x16xf32>
    "tpu.trace_start"() <{level = 10 : i32, message = "bqk,bkd->bqd"}> : () -> ()
    %cst_72 = arith.constant dense<0.000000e+00> : vector<1x16x8xf32>
    %94 = tpu.matmul %93, %78, %cst_72 {dimension_numbers = #tpu.dot_dimension_numbers<[2], [1], [1], [2], [0, 0, 0, 1, 1, 2], [0], [0]>} : vector<1x16x16xf32>, vector<1x16x8xf32>, vector<1x16x8xf32> -> vector<1x16x8xf32>
    "tpu.trace_stop"() : () -> ()
    %c0_73 = arith.constant 0 : index
    %c0_74 = arith.constant 0 : index
    %c24_75 = arith.constant 24 : index
    %95 = vector.load %arg7[%c0_73, %c0_74, %c24_75] : memref<1x16x32xf32, #tpu.memory_space<vmem>>, vector<1x16x8xf32>
    tpu.vector_store %arg7[%c0_73, %c0_74, %c24_75], %94 {strides = array<i32>} : memref<1x16x32xf32, #tpu.memory_space<vmem>>, vector<1x16x8xf32>,
    %c0_76 = arith.constant 0 : index
    %c0_77 = arith.constant 0 : index
    %c0_78 = arith.constant 0 : index
    %96 = vector.load %arg7[%c0_76, %c0_77, %c0_78] : memref<1x16x32xf32, #tpu.memory_space<vmem>>, vector<1x16x32xf32>
    %c0_79 = arith.constant 0 : index
    %c0_80 = arith.constant 0 : index
    %c0_81 = arith.constant 0 : index
    %97 = vector.load %arg5[%c0_79, %c0_80, %c0_81] : memref<1x16x32xf32, #tpu.memory_space<vmem>>, vector<1x16x32xf32>
    tpu.vector_store %arg5[%c0_79, %c0_80, %c0_81], %96 {strides = array<i32>} : memref<1x16x32xf32, #tpu.memory_space<vmem>>, vector<1x16x32xf32>,
    return
  }
  func.func @transform_0(%arg0: i32) -> (i32, i32, i32) {
    %c0_i32 = arith.constant 0 : i32
    %c0_i32_0 = arith.constant 0 : i32
    %c0_i32_1 = arith.constant 0 : i32
    return %arg0, %c0_i32, %c0_i32_0 : i32, i32, i32
  }
  func.func @transform_1(%arg0: i32) -> (i32, i32) {
    %c0_i32 = arith.constant 0 : i32
    %c0_i32_0 = arith.constant 0 : i32
    %c0_i32_1 = arith.constant 0 : i32
    return %c0_i32, %c0_i32_0 : i32, i32
  }
  func.func @transform_2(%arg0: i32) -> (i32, i32, i32) {
    %c0_i32 = arith.constant 0 : i32
    %c0_i32_0 = arith.constant 0 : i32
    %c0_i32_1 = arith.constant 0 : i32
    %c0_i32_2 = arith.constant 0 : i32
    return %c0_i32, %c0_i32_0, %c0_i32_1 : i32, i32, i32
  }
  func.func @transform_3(%arg0: i32) -> (i32, i32, i32) {
    %c0_i32 = arith.constant 0 : i32
    %c0_i32_0 = arith.constant 0 : i32
    %c0_i32_1 = arith.constant 0 : i32
    return %arg0, %c0_i32, %c0_i32_0 : i32, i32, i32
  }
  func.func @transform_4(%arg0: i32) -> (i32, i32, i32) {
    %c0_i32 = arith.constant 0 : i32
    %c0_i32_0 = arith.constant 0 : i32
    %c0_i32_1 = arith.constant 0 : i32
    return %arg0, %c0_i32, %c0_i32_0 : i32, i32, i32
  }
}

</mosaic_0001>

<llo_original>
// kernel: tpu_custom_call.1
$region0: #{tpu_custom_call.1}
  #allocation0 [shape = 'u32[]', space=smem, size = 0x4, offset = 0x4, fixed_abs, tag = 'smem constant byte address 0x4 - core index']
  #allocation1 [shape = 'u32[144,128]{1,0:T(1,128)}', space=vmem, size = 0x12000, scoped, tag = 'internal scratch']
  #allocation2 [shape = 'f32[1,16,96]{2,1,0:T(8,128)}', space=vmem, size = 0x2000, scoped, tag = 'scratch operand']
  #allocation3 [shape = 'f32[1,16,32]{2,1,0:T(8,128)}', space=vmem, size = 0x2000, scoped, tag = 'scratch operand']
  %s0 = inlined_call_operand.hbm [shape: f32[2,16,32], index: 0, kind: input, shape index: {}]
  %s1 = inlined_call_operand.hbm [shape: f32[32,96], index: 1, kind: input, shape index: {}]
  %s2 = inlined_call_operand.hbm [shape: f32[4,16,16], index: 2, kind: input, shape index: {}]
  %s3 = inlined_call_operand.hbm [shape: bf16[2,16,16], index: 3, kind: input, shape index: {}]
  %s4 = inlined_call_operand.hbm [shape: f32[2,16,32], index: 4, kind: output, shape index: {}]
  %s5 = sld [smem:[#allocation0]]
  $region65: #{tpu_custom_call.1} parent=0
    _
  %s7 = ssub.s32 1, %s5
  %s8 = scalar_select 0, %s7, %s5
  $region1: #{tpu_custom_call.1} parent=0
    #allocation4 [shape = 'u8[16384]{0}', space=vmem, size = 0x4000, scoped, tag = 'input window, operand 0']
    #allocation5 [shape = 's32[2]{0}', space=sflag, size = 0x8, scoped, tag = 'scoped memory for tpu_custom_call.1']
    #allocation6 [shape = 's32[2]{0}', space=sflag, size = 0x8, scoped, tag = 'scoped memory for tpu_custom_call.1']
    #allocation7 [shape = 'u8[16384]{0}', space=vmem, size = 0x4000, scoped, tag = 'input window, operand 1, single buffered']
    #allocation8 [shape = 's32[1]{0}', space=sflag, size = 0x4, scoped, tag = 'scoped memory for tpu_custom_call.1']
    #allocation9 [shape = 'u8[32768]{0}', space=vmem, size = 0x8000, scoped, tag = 'input window, operand 2, single buffered']
    #allocation10 [shape = 'u8[8192]{0}', space=vmem, size = 0x2000, scoped, tag = 'input window, operand 3']
    #allocation11 [shape = 's32[2]{0}', space=sflag, size = 0x8, scoped, tag = 'scoped memory for tpu_custom_call.1']
    #allocation12 [shape = 'u8[16384]{0}', space=vmem, size = 0x4000, scoped, tag = 'output window, operand 0']
    %9 = vsyncpa [#allocation5], 0
    %s10 = scalar_lea.sflag [#allocation5], 1
    %11 = vsyncpa %s10, 0
    %12 = vsyncpa [#allocation8], 0
    %13 = vsyncpa [#allocation11], 0
    %s14 = scalar_lea.sflag [#allocation11], 1
    %15 = vsyncpa %s14, 0
    %16 = vsyncpa [#allocation6], 0
    %s17 = scalar_lea.sflag [#allocation6], 1
    %18 = vsyncpa %s17, 0
    loop: start=0, step=1, limit=4
    $region2: #{tpu_custom_call.1} parent=1 // loop_pre_header
      _
    $region3: #{tpu_custom_call.1} parent=1 // loop_header
      %s20 = sphi 0, %s24
      %p21 = scmp.ge.s32.totalorder %s20, 4
      %s30 = sphi 0, %s32
      %s33 = sphi 0, %s30
      %s34 = sphi 0, %s33
      %s50 = sphi 0, %s34
      %s54 = sphi 0, %s54
      %s56 = sphi 0, %s54
      %s57 = sphi 0, %s56
      %s71 = sphi 0, %s57
      %s75 = sphi 0, %s75
      %s77 = sphi 0, %s75
      %s78 = sphi 0, %s77
      %s92 = sphi 0, %s78
      %s98 = sphi 0, %s100
      %s101 = sphi 0, %s98
      %s102 = sphi 0, %s101
      %s118 = sphi 0, %s102
      %s124 = sphi 0, %s126
      %s127 = sphi 0, %s124
      %s128 = sphi 0, %s127
      %s144 = sphi 0, %s128
    $region4: #{tpu_custom_call.1} parent=1 // loop_header_branch
      %23 = sbr.rel (%p21) target = $region8
    $region5: #{tpu_custom_call.1} parent=1 // loop_body
      %s25 = ssub.s32 %s20, 1
      %s26 = ssub.s32 %s20, 2
      %s27 = sadd.s32 %s20, 1
      %s28 = ssub.s32 %s20, %s27
      %p29 = scmp.eq.s32.totalorder %s28, 0
      %s31 = sadd.s32 %s30, 1
      %s32 = scalar_select %p29, %s30, %s31
      %p35 = pneg %p29
      %p36 = scmp.eq.s32.totalorder %s20, 1
      %p37 = por %p35, %p36
      %p38 = scmp.ne.s32.totalorder %s30, %s33
      %p39 = scmp.eq.s32.totalorder %s20, 0
      %p40 = por %p38, %p39
      %p41 = scmp.ne.s32.totalorder %s30, %s33
      %p42 = scmp.eq.s32.totalorder %s25, 1
      %p43 = por %p41, %p42
      %p44 = scmp.ne.s32.totalorder %s33, %s34
      %p45 = scmp.eq.s32.totalorder %s25, 0
      %p46 = por %p44, %p45
      %p47 = scmp.ne.s32.totalorder %s33, %s34
      %p48 = scmp.eq.s32.totalorder %s26, 1
      %p49 = por %p47, %p48
      %p51 = scmp.ne.s32.totalorder %s34, %s50
      %p52 = scmp.eq.s32.totalorder %s26, 0
      %p53 = por %p51, %p52
      %s55 = sadd.s32 %s54, 1
      %p58 = scmp.eq.s32.totalorder %s20, 1
      %p59 = scmp.ne.s32.totalorder %s54, %s56
      %p60 = scmp.eq.s32.totalorder %s20, 0
      %p61 = por %p59, %p60
      %p62 = scmp.ne.s32.totalorder %s54, %s56
      %p63 = scmp.eq.s32.totalorder %s25, 1
      %p64 = por %p62, %p63
      %p65 = scmp.ne.s32.totalorder %s56, %s57
      %p66 = scmp.eq.s32.totalorder %s25, 0
      %p67 = por %p65, %p66
      %p68 = scmp.ne.s32.totalorder %s56, %s57
      %p69 = scmp.eq.s32.totalorder %s26, 1
      %p70 = por %p68, %p69
      %p72 = scmp.ne.s32.totalorder %s57, %s71
      %p73 = scmp.eq.s32.totalorder %s26, 0
      %p74 = por %p72, %p73
      %s76 = sadd.s32 %s75, 1
      %p79 = scmp.eq.s32.totalorder %s20, 1
      %p80 = scmp.ne.s32.totalorder %s75, %s77
      %p81 = scmp.eq.s32.totalorder %s20, 0
      %p82 = por %p80, %p81
      %p83 = scmp.ne.s32.totalorder %s75, %s77
      %p84 = scmp.eq.s32.totalorder %s25, 1
      %p85 = por %p83, %p84
      %p86 = scmp.ne.s32.totalorder %s77, %s78
      %p87 = scmp.eq.s32.totalorder %s25, 0
      %p88 = por %p86, %p87
      %p89 = scmp.ne.s32.totalorder %s77, %s78
      %p90 = scmp.eq.s32.totalorder %s26, 1
      %p91 = por %p89, %p90
      %p93 = scmp.ne.s32.totalorder %s78, %s92
      %p94 = scmp.eq.s32.totalorder %s26, 0
      %p95 = por %p93, %p94
      %s96 = ssub.s32 %s20, %s27
      %p97 = scmp.eq.s32.totalorder %s96, 0
      %s99 = sadd.s32 %s98, 1
      %s100 = scalar_select %p97, %s98, %s99
      %p103 = pneg %p97
      %p104 = scmp.eq.s32.totalorder %s20, 1
      %p105 = por %p103, %p104
      %p106 = scmp.ne.s32.totalorder %s98, %s101
      %p107 = scmp.eq.s32.totalorder %s20, 0
      %p108 = por %p106, %p107
      %p109 = scmp.ne.s32.totalorder %s98, %s101
      %p110 = scmp.eq.s32.totalorder %s25, 1
      %p111 = por %p109, %p110
      %p112 = scmp.ne.s32.totalorder %s101, %s102
      %p113 = scmp.eq.s32.totalorder %s25, 0
      %p114 = por %p112, %p113
      %p115 = scmp.ne.s32.totalorder %s101, %s102
      %p116 = scmp.eq.s32.totalorder %s26, 1
      %p117 = por %p115, %p116
      %p119 = scmp.ne.s32.totalorder %s102, %s118
      %p120 = scmp.eq.s32.totalorder %s26, 0
      %p121 = por %p119, %p120
      %s122 = ssub.s32 %s20, %s27
      %p123 = scmp.eq.s32.totalorder %s122, 0
      %s125 = sadd.s32 %s124, 1
      %s126 = scalar_select %p123, %s124, %s125
      %p129 = pneg %p123
      %p130 = scmp.eq.s32.totalorder %s20, 1
      %p131 = por %p129, %p130
      %p132 = scmp.ne.s32.totalorder %s124, %s127
      %p133 = scmp.eq.s32.totalorder %s20, 0
      %p134 = por %p132, %p133
      %p135 = scmp.ne.s32.totalorder %s124, %s127
      %p136 = scmp.eq.s32.totalorder %s25, 1
      %p137 = por %p135, %p136
      %p138 = scmp.ne.s32.totalorder %s127, %s128
      %p139 = scmp.eq.s32.totalorder %s25, 0
      %p140 = por %p138, %p139
      %p141 = scmp.ne.s32.totalorder %s127, %s128
      %p142 = scmp.eq.s32.totalorder %s26, 1
      %p143 = por %p141, %p142
      %p145 = scmp.ne.s32.totalorder %s128, %s144
      %p146 = scmp.eq.s32.totalorder %s26, 0
      %p147 = por %p145, %p146
      %p148 = scmp.le.s32.totalorder 1, %s20
      %p149 = scmp.lt.s32.totalorder %s20, 3
      %p150 = pnand %p148, %p149
      %p151 = pneg %p150
      // Predicated region
      $region9: #{tpu_custom_call.1} parent=5 // pred_check
        _
      $region10: #{tpu_custom_call.1} parent=5 // pred_check_branch
        %153 = sbr.rel (%p150) target = $region12
      $region11: #{tpu_custom_call.1} parent=5 // pred_region
        %s154 = ssub.s32 %s20, 1
        // Predicated region
        $region13: #{tpu_custom_call.1} parent=11 // pred_check
          %p155 = pneg %p67
        $region14: #{tpu_custom_call.1} parent=11 // pred_check_branch
          %157 = sbr.rel (%p155) target = $region16
        $region15: #{tpu_custom_call.1} parent=11 // pred_region
          %s159 = ssub.s32 512, 512
          %160 = vsyncadd [#allocation8], %s159
          %s161 = sshll.u32 [#allocation7], 4
          %s162 = int_to_ptr.vmem [resolvable:$true] %s161
          %167 = dma.hbm_to_vmem [thread:$0]  %s1, 512, %s162, [#allocation8], 128, 128, 8
        $region16: #{tpu_custom_call.1} parent=11 // pred_fallthru
          _
        // Predicated region
        $region17: #{tpu_custom_call.1} parent=11 // pred_check
          %p168 = pneg %p88
        $region18: #{tpu_custom_call.1} parent=11 // pred_check_branch
          %170 = sbr.rel (%p168) target = $region20
        $region19: #{tpu_custom_call.1} parent=11 // pred_region
          %s172 = ssub.s32 1024, 1024
          %173 = vsyncadd [#allocation8], %s172
          %s174 = sshll.u32 [#allocation9], 4
          %s175 = int_to_ptr.vmem [resolvable:$true] %s174
          %180 = dma.hbm_to_vmem [thread:$0]  %s2, 1024, %s175, [#allocation8], 128, 128, 8
        $region20: #{tpu_custom_call.1} parent=11 // pred_fallthru
          _
      $region12: #{tpu_custom_call.1} parent=5 // pred_fallthru
        _
      %p181 = scmp.lt.s32.totalorder %s20, 2
      // Predicated region
      $region21: #{tpu_custom_call.1} parent=5 // pred_check
        %p182 = pneg %p181
      $region22: #{tpu_custom_call.1} parent=5 // pred_check_branch
        %184 = sbr.rel (%p182) target = $region24
      $region23: #{tpu_custom_call.1} parent=5 // pred_region
        // Predicated region
        $region25: #{tpu_custom_call.1} parent=23 // pred_check
          %p185 = pneg %p40
        $region26: #{tpu_custom_call.1} parent=23 // pred_check_branch
          %187 = sbr.rel (%p185) target = $region28
        $region27: #{tpu_custom_call.1} parent=23 // pred_region
          %s188 = sand.u32 %s30, 1
          %s189 = scalar_lea.sflag [#allocation5], %s188
          %s190 = sand.u32 %s30, 1
          %s191 = smul.addr %s190, 16
          %s192 = scalar_lea.vmem [#allocation4], %s191
          %s194 = ssub.s32 256, 256
          %195 = vsyncadd %s189, %s194
          %s196 = smul.addr %s20, 2
          %s197 = smul.addr %s196, 128
          %s198 = scalar_lea.hbm %s0, %s197
          %s199 = sshll.u32 %s192, 4
          %s200 = int_to_ptr.vmem [resolvable:$true] %s199
          %205 = dma.hbm_to_vmem [thread:$0]  %s198, 256, %s200, %s189, 128, 128, 8
        $region28: #{tpu_custom_call.1} parent=23 // pred_fallthru
          _
        // Predicated region
        $region29: #{tpu_custom_call.1} parent=23 // pred_check
          %p206 = pneg %p108
        $region30: #{tpu_custom_call.1} parent=23 // pred_check_branch
          %208 = sbr.rel (%p206) target = $region32
        $region31: #{tpu_custom_call.1} parent=23 // pred_region
          %s209 = sand.u32 %s98, 1
          %s210 = scalar_lea.sflag [#allocation11], %s209
          %s211 = sand.u32 %s98, 1
          %s212 = smul.addr %s211, 8
          %s213 = scalar_lea.vmem [#allocation10], %s212
          %s215 = ssub.s32 128, 128
          %216 = vsyncadd %s210, %s215
          %s217 = smul.addr %s20, 2
          %s218 = smul.addr %s217, 64
          %s219 = scalar_lea.hbm %s3, %s218
          %s220 = sshll.u32 %s213, 4
          %s221 = int_to_ptr.vmem [resolvable:$true] %s220
          %226 = dma.hbm_to_vmem [thread:$0]  %s219, 128, %s221, %s210, 64, 64, 4
        $region32: #{tpu_custom_call.1} parent=23 // pred_fallthru
          _
      $region24: #{tpu_custom_call.1} parent=5 // pred_fallthru
        _
      %p227 = scmp.le.s32.totalorder 1, %s20
      %p228 = scmp.lt.s32.totalorder %s20, 3
      %p229 = pnand %p227, %p228
      %p230 = pneg %p229
      // Predicated region
      $region33: #{tpu_custom_call.1} parent=5 // pred_check
        _
      $region34: #{tpu_custom_call.1} parent=5 // pred_check_branch
        %232 = sbr.rel (%p229) target = $region36
      $region35: #{tpu_custom_call.1} parent=5 // pred_region
        %s233 = ssub.s32 %s20, 1
        %s234 = sand.u32 %s33, 1
        %s235 = scalar_lea.sflag [#allocation5], %s234
        %s236 = sand.u32 %s33, 1
        %s237 = smul.addr %s236, 16
        %s238 = scalar_lea.vmem [#allocation4], %s237
        // Predicated region
        $region37: #{tpu_custom_call.1} parent=35 // pred_check
          %p239 = pneg %p46
        $region38: #{tpu_custom_call.1} parent=35 // pred_check_branch
          %241 = sbr.rel (%p239) target = $region40
        $region39: #{tpu_custom_call.1} parent=35 // pred_region
          %242 = dma.done %s235, 256
        $region40: #{tpu_custom_call.1} parent=35 // pred_fallthru
          _
        // Predicated region
        $region41: #{tpu_custom_call.1} parent=35 // pred_check
          %p243 = pneg %p67
        $region42: #{tpu_custom_call.1} parent=35 // pred_check_branch
          %245 = sbr.rel (%p243) target = $region44
        $region43: #{tpu_custom_call.1} parent=35 // pred_region
          %246 = dma.done [#allocation8], 512
        $region44: #{tpu_custom_call.1} parent=35 // pred_fallthru
          _
        // Predicated region
        $region45: #{tpu_custom_call.1} parent=35 // pred_check
          %p247 = pneg %p88
        $region46: #{tpu_custom_call.1} parent=35 // pred_check_branch
          %249 = sbr.rel (%p247) target = $region48
        $region47: #{tpu_custom_call.1} parent=35 // pred_region
          %250 = dma.done [#allocation8], 1024
        $region48: #{tpu_custom_call.1} parent=35 // pred_fallthru
          _
        %s251 = sand.u32 %s101, 1
        %s252 = scalar_lea.sflag [#allocation11], %s251
        %s253 = sand.u32 %s101, 1
        %s254 = smul.addr %s253, 8
        %s255 = scalar_lea.vmem [#allocation10], %s254
        // Predicated region
        $region49: #{tpu_custom_call.1} parent=35 // pred_check
          %p256 = pneg %p114
        $region50: #{tpu_custom_call.1} parent=35 // pred_check_branch
          %258 = sbr.rel (%p256) target = $region52
        $region51: #{tpu_custom_call.1} parent=35 // pred_region
          %259 = dma.done %s252, 128
        $region52: #{tpu_custom_call.1} parent=35 // pred_fallthru
          _
        %s260 = sand.u32 %s33, 1
        %s261 = scalar_lea.sflag [#allocation5], %s260
        %s262 = sand.u32 %s33, 1
        %s263 = smul.addr %s262, 16
        %s264 = scalar_lea.vmem [#allocation4], %s263
        %p265 = pneg %p46
        %p266 = pneg %p43
        %p267 = pneg %p67
        %p268 = pneg %p64
        %p269 = pneg %p88
        %p270 = pneg %p85
        %s271 = sand.u32 %s101, 1
        %s272 = scalar_lea.sflag [#allocation11], %s271
        %s273 = sand.u32 %s101, 1
        %s274 = smul.addr %s273, 8
        %s275 = scalar_lea.vmem [#allocation10], %s274
        %p276 = pneg %p114
        %p277 = pneg %p111
        %p278 = pneg %p140
        %p279 = pneg %p137
        %s280 = sand.u32 %s127, 1
        %s281 = scalar_lea.sflag [#allocation6], %s280
        %s282 = sand.u32 %s127, 1
        %s283 = smul.addr %s282, 16
        %s284 = scalar_lea.vmem [#allocation12], %s283
        %v285 = vld [vmem:[%s238] sm:$0xff]
        %v286 = vld [vmem:[%s238 + $0x8] sm:$0xff]
        %v287 = vld [vmem:[#allocation7] sm:$0xff]
        %v288 = vld [vmem:[#allocation7 + $0x8] sm:$0xff]
        %v289 = vld [vmem:[#allocation7 + $0x10] sm:$0xff]
        %v290 = vld [vmem:[#allocation7 + $0x18] sm:$0xff]
        %vm291 = vcmask 261120
        %v293 = vsel %vm291, %v285, 0
        %v296 = vsel %vm291, %v286, 0
        %298 = vmatprep.subr.mxu0 0.0
        %299 = vmatpush1.msra.mxu0 %v287
        %300 = vmatprep.subr.mxu0 0.0
        %301 = vmatpush1.msra.mxu0 %v288
        %302 = vmatprep.subr.mxu0 0.0
        %303 = vmatpush1.msra.mxu0 %v289
        %304 = vmatprep.subr.mxu0 0.0
        %305 = vmatpush1.msra.mxu0 %v290
        %306 = vmatprep.subr.mxu0 0.0
        %307 = vmatpush1.msra.mxu0 0.0
        %308 = vmatprep.subr.mxu0 0.0
        %309 = vmatpush1.msra.mxu0 0.0
        %310 = vmatprep.subr.mxu0 0.0
        %311 = vmatpush1.msra.mxu0 0.0
        %312 = vmatprep.subr.mxu0 0.0
        %313 = vmatpush1.msra.mxu0 0.0
        %314 = vmatprep.subr.mxu0 0.0
        %315 = vmatpush1.msra.mxu0 0.0
        %316 = vmatprep.subr.mxu0 0.0
        %317 = vmatpush1.msra.mxu0 0.0
        %318 = vmatprep.subr.mxu0 0.0
        %319 = vmatpush1.msra.mxu0 0.0
        %320 = vmatprep.subr.mxu0 0.0
        %321 = vmatpush1.msra.mxu0 0.0
        %322 = vmatprep.subr.mxu0 0.0
        %323 = vmatpush1.msra.mxu0 0.0
        %324 = vmatprep.subr.mxu0 0.0
        %325 = vmatpush1.msra.mxu0 0.0
        %326 = vmatprep.subr.mxu0 0.0
        %327 = vmatpush1.msra.mxu0 0.0
        %328 = vmatprep.subr.mxu0 0.0
        %329 = vmatpush1.msra.mxu0 0.0
        %330 = vmatprep.subr.mxu0 0.0
        %331 = vmatpush1.msra.mxu0 0.0
        %332 = vmatprep.subr.mxu0 0.0
        %333 = vmatpush1.msra.mxu0 0.0
        %334 = vmatprep.subr.mxu0 0.0
        %335 = vmatpush1.msra.mxu0 0.0
        %336 = vmatprep.subr.mxu0 0.0
        %337 = vmatpush1.msra.mxu0 0.0
        %338 = vmatprep.subr.mxu0 0.0
        %339 = vmatpush1.msra.mxu0 0.0
        %340 = vmatprep.subr.mxu0 0.0
        %341 = vmatpush1.msra.mxu0 0.0
        %342 = vmatprep.subr.mxu0 0.0
        %343 = vmatpush1.msra.mxu0 0.0
        %344 = vmatprep.subr.mxu0 0.0
        %345 = vmatpush1.msra.mxu0 0.0
        %346 = vmatprep.subr.mxu0 0.0
        %347 = vmatpush1.msra.mxu0 0.0
        %348 = vmatprep.subr.mxu0 0.0
        %349 = vmatpush1.msra.mxu0 0.0
        %350 = vmatprep.subr.mxu0 0.0
        %351 = vmatpush1.msra.mxu0 0.0
        %352 = vmatprep.subr.mxu0 0.0
        %353 = vmatpush1.msra.mxu0 0.0
        %354 = vmatprep.subr.mxu0 0.0
        %355 = vmatpush1.msra.mxu0 0.0
        %356 = vmatprep.subr.mxu0 0.0
        %357 = vmatpush1.msra.mxu0 0.0
        %358 = vmatprep.subr.mxu0 0.0
        %359 = vmatpush1.msra.mxu0 0.0
        %360 = vmatprep.subr.mxu0 0.0
        %361 = vmatpush1.msra.mxu0 0.0
        %362 = vmatprep.mubr.f32.mxu0 0.0
        %363 = vmatmul.mubr.f32.gmra.mrb[0].mxu0 %v293
        %v364 = vpop.f32.mrb[0].mxu0
        %v365 = vadd.f32 0.0, %v364
        %v366 = vpop.f32.mrb[0].mxu0
        %367 = vmatprep.mubr.f32.mxu0 0.0
        %368 = vmatmul.mubr.f32.gmra.mrb[0].mxu0 %v296
        %v369 = vpop.f32.mrb[0].mxu0
        %v370 = vadd.f32 0.0, %v369
        %v371 = vpop.f32.mrb[0].mxu0
        %372 = vdwg.mxu0
        %vm373 = vcmask 785408
        %374 = vst.msk [vmem:[#allocation2] sm:$0xff] %vm373, %v365
        %375 = vst.msk [vmem:[#allocation2 + $0x8] sm:$0xff] %vm373, %v370
        %v376 = vld [vmem:[%s255] sm:$0xf]
        %v377 = vld [vmem:[%s255 + $0x4] sm:$0xf]
        %v378 = vunpack.c.l.bf16 %v376
        %v379 = vunpack.c.l.bf16 %v377
        %v380 = vld [vmem:[#allocation2] sm:$0xff]
        %v381 = vld [vmem:[#allocation2 + $0x8] sm:$0xff]
        %v382 = vmul.f32 %v380, 0.35355338
        %v383 = vmul.f32 %v381, 0.35355338
        %v384 = vld [vmem:[#allocation9] sm:$0xff]
        %v385 = vld [vmem:[#allocation9 + $0x8] sm:$0xff]
        %388 = vrot.lane.b32.xlu0 %v380, 96
        %v389 = vpop.permute.xlu0 %388
        %390 = vrot.lane.b32.xlu0 %v381, 96
        %v391 = vpop.permute.xlu0 %390
        %vm392 = vcmask 64512
        %v394 = vsel %vm392, %v382, 0
        %v397 = vsel %vm392, %v383, 0
        %v399 = vsel %vm392, %v389, 0
        %v401 = vsel %vm392, %v391, 0
        %403 = vmatprep.subr.mxu0 0.0
        %404 = vmatpush1.xpose.msra.mxu0 %v399
        %405 = vmatprep.subr.mxu0 0.0
        %406 = vmatpush1.xpose.msra.mxu0 %v401
        %407 = vmatprep.subr.mxu0 0.0
        %408 = vmatpush1.xpose.msra.mxu0 0.0
        %409 = vmatprep.subr.mxu0 0.0
        %410 = vmatpush1.xpose.msra.mxu0 0.0
        %411 = vmatprep.subr.mxu0 0.0
        %412 = vmatpush1.xpose.msra.mxu0 0.0
        %413 = vmatprep.subr.mxu0 0.0
        %414 = vmatpush1.xpose.msra.mxu0 0.0
        %415 = vmatprep.subr.mxu0 0.0
        %416 = vmatpush1.xpose.msra.mxu0 0.0
        %417 = vmatprep.subr.mxu0 0.0
        %418 = vmatpush1.xpose.msra.mxu0 0.0
        %419 = vmatprep.subr.mxu0 0.0
        %420 = vmatpush1.xpose.msra.mxu0 0.0
        %421 = vmatprep.subr.mxu0 0.0
        %422 = vmatpush1.xpose.msra.mxu0 0.0
        %423 = vmatprep.subr.mxu0 0.0
        %424 = vmatpush1.xpose.msra.mxu0 0.0
        %425 = vmatprep.subr.mxu0 0.0
        %426 = vmatpush1.xpose.msra.mxu0 0.0
        %427 = vmatprep.subr.mxu0 0.0
        %428 = vmatpush1.xpose.msra.mxu0 0.0
        %429 = vmatprep.subr.mxu0 0.0
        %430 = vmatpush1.xpose.msra.mxu0 0.0
        %431 = vmatprep.subr.mxu0 0.0
        %432 = vmatpush1.xpose.msra.mxu0 0.0
        %433 = vmatprep.subr.mxu0 0.0
        %434 = vmatpush1.xpose.msra.mxu0 0.0
        %435 = vmatprep.subr.mxu0 0.0
        %436 = vmatpush1.xpose.msra.mxu0 0.0
        %437 = vmatprep.subr.mxu0 0.0
        %438 = vmatpush1.xpose.msra.mxu0 0.0
        %439 = vmatprep.subr.mxu0 0.0
        %440 = vmatpush1.xpose.msra.mxu0 0.0
        %441 = vmatprep.subr.mxu0 0.0
        %442 = vmatpush1.xpose.msra.mxu0 0.0
        %443 = vmatprep.subr.mxu0 0.0
        %444 = vmatpush1.xpose.msra.mxu0 0.0
        %445 = vmatprep.subr.mxu0 0.0
        %446 = vmatpush1.xpose.msra.mxu0 0.0
        %447 = vmatprep.subr.mxu0 0.0
        %448 = vmatpush1.xpose.msra.mxu0 0.0
        %449 = vmatprep.subr.mxu0 0.0
        %450 = vmatpush1.xpose.msra.mxu0 0.0
        %451 = vmatprep.subr.mxu0 0.0
        %452 = vmatpush1.xpose.msra.mxu0 0.0
        %453 = vmatprep.subr.mxu0 0.0
        %454 = vmatpush1.xpose.msra.mxu0 0.0
        %455 = vmatprep.subr.mxu0 0.0
        %456 = vmatpush1.xpose.msra.mxu0 0.0
        %457 = vmatprep.subr.mxu0 0.0
        %458 = vmatpush1.xpose.msra.mxu0 0.0
        %459 = vmatprep.subr.mxu0 0.0
        %460 = vmatpush1.xpose.msra.mxu0 0.0
        %461 = vmatprep.subr.mxu0 0.0
        %462 = vmatpush1.xpose.msra.mxu0 0.0
        %463 = vmatprep.subr.mxu0 0.0
        %464 = vmatpush1.xpose.msra.mxu0 0.0
        %465 = vmatprep.subr.mxu0 0.0
        %466 = vmatpush1.xpose.msra.mxu0 0.0
        %467 = vmatprep.mubr.f32.mxu0 0.0
        %468 = vmatmul.mubr.f32.gmra.mrb[0].mxu0 %v394
        %v469 = vpop.f32.mrb[0].mxu0
        %v470 = vadd.f32 %v384, %v469
        %v471 = vpop.f32.mrb[0].mxu0
        %472 = vmatprep.mubr.f32.mxu0 0.0
        %473 = vmatmul.mubr.f32.gmra.mrb[0].mxu0 %v397
        %v474 = vpop.f32.mrb[0].mxu0
        %v475 = vadd.f32 %v385, %v474
        %v476 = vpop.f32.mrb[0].mxu0
        %477 = vdwg.mxu0
        %v478 = vadd.f32 %v470, %v378
        %v479 = vadd.f32 %v475, %v379
        %vm480 = vcmask 130048
        %v481 = vsel %vm480, %v478, -inf
        %482 = vmax.xlane.f32.xlu0 %v481
        %v483 = vpop.xlane.xlu0 %482
        %v484 = vsel %vm480, %v479, -inf
        %485 = vmax.xlane.f32.xlu0 %v484
        %v486 = vpop.xlane.xlu0 %485
        %v487 = vsub.f32 %v478, %v483
        %v488 = vsub.f32 %v479, %v486
        %v489 = vmul.f32 %v487, 1.442695
        %v490 = vpow.pop %v489
        %v491 = vmul.f32 %v488, 1.442695
        %v492 = vpow.pop %v491
        %v493 = vsel %vm480, %v490, 0.0
        %494 = vadd.xlane.f32.xlu0 %v493
        %v495 = vpop.xlane.xlu0 %494
        %v496 = vsel %vm480, %v492, 0.0
        %497 = vadd.xlane.f32.xlu0 %v496
        %v498 = vpop.xlane.xlu0 %497
        %v499 = vrcp.pop %v495
        %v500 = vmul.f32 %v490, %v499
        %v501 = vrcp.pop %v498
        %v502 = vmul.f32 %v492, %v501
        %503 = vrot.lane.b32.xlu0 %v380, 64
        %v504 = vpop.permute.xlu0 %503
        %505 = vrot.lane.b32.xlu0 %v381, 64
        %v506 = vpop.permute.xlu0 %505
        %v510 = vsel %vm480, %v500, 0
        %v513 = vsel %vm480, %v502, 0
        %515 = vmatprep.subr.mxu0 0.0
        %516 = vmatpush1.msra.mxu0 %v504
        %517 = vmatprep.subr.mxu0 0.0
        %518 = vmatpush1.msra.mxu0 %v506
        %519 = vmatprep.subr.mxu0 0.0
        %520 = vmatpush1.msra.mxu0 0.0
        %521 = vmatprep.subr.mxu0 0.0
        %522 = vmatpush1.msra.mxu0 0.0
        %523 = vmatprep.subr.mxu0 0.0
        %524 = vmatpush1.msra.mxu0 0.0
        %525 = vmatprep.subr.mxu0 0.0
        %526 = vmatpush1.msra.mxu0 0.0
        %527 = vmatprep.subr.mxu0 0.0
        %528 = vmatpush1.msra.mxu0 0.0
        %529 = vmatprep.subr.mxu0 0.0
        %530 = vmatpush1.msra.mxu0 0.0
        %531 = vmatprep.subr.mxu0 0.0
        %532 = vmatpush1.msra.mxu0 0.0
        %533 = vmatprep.subr.mxu0 0.0
        %534 = vmatpush1.msra.mxu0 0.0
        %535 = vmatprep.subr.mxu0 0.0
        %536 = vmatpush1.msra.mxu0 0.0
        %537 = vmatprep.subr.mxu0 0.0
        %538 = vmatpush1.msra.mxu0 0.0
        %539 = vmatprep.subr.mxu0 0.0
        %540 = vmatpush1.msra.mxu0 0.0
        %541 = vmatprep.subr.mxu0 0.0
        %542 = vmatpush1.msra.mxu0 0.0
        %543 = vmatprep.subr.mxu0 0.0
        %544 = vmatpush1.msra.mxu0 0.0
        %545 = vmatprep.subr.mxu0 0.0
        %546 = vmatpush1.msra.mxu0 0.0
        %547 = vmatprep.subr.mxu0 0.0
        %548 = vmatpush1.msra.mxu0 0.0
        %549 = vmatprep.subr.mxu0 0.0
        %550 = vmatpush1.msra.mxu0 0.0
        %551 = vmatprep.subr.mxu0 0.0
        %552 = vmatpush1.msra.mxu0 0.0
        %553 = vmatprep.subr.mxu0 0.0
        %554 = vmatpush1.msra.mxu0 0.0
        %555 = vmatprep.subr.mxu0 0.0
        %556 = vmatpush1.msra.mxu0 0.0
        %557 = vmatprep.subr.mxu0 0.0
        %558 = vmatpush1.msra.mxu0 0.0
        %559 = vmatprep.subr.mxu0 0.0
        %560 = vmatpush1.msra.mxu0 0.0
        %561 = vmatprep.subr.mxu0 0.0
        %562 = vmatpush1.msra.mxu0 0.0
        %563 = vmatprep.subr.mxu0 0.0
        %564 = vmatpush1.msra.mxu0 0.0
        %565 = vmatprep.subr.mxu0 0.0
        %566 = vmatpush1.msra.mxu0 0.0
        %567 = vmatprep.subr.mxu0 0.0
        %568 = vmatpush1.msra.mxu0 0.0
        %569 = vmatprep.subr.mxu0 0.0
        %570 = vmatpush1.msra.mxu0 0.0
        %571 = vmatprep.subr.mxu0 0.0
        %572 = vmatpush1.msra.mxu0 0.0
        %573 = vmatprep.subr.mxu0 0.0
        %574 = vmatpush1.msra.mxu0 0.0
        %575 = vmatprep.subr.mxu0 0.0
        %576 = vmatpush1.msra.mxu0 0.0
        %577 = vmatprep.subr.mxu0 0.0
        %578 = vmatpush1.msra.mxu0 0.0
        %579 = vmatprep.mubr.f32.mxu0 0.0
        %580 = vmatmul.mubr.f32.gmra.mrb[0].mxu0 %v510
        %v581 = vpop.f32.mrb[0].mxu0
        %v582 = vadd.f32 0.0, %v581
        %v583 = vpop.f32.mrb[0].mxu0
        %584 = vmatprep.mubr.f32.mxu0 0.0
        %585 = vmatmul.mubr.f32.gmra.mrb[0].mxu0 %v513
        %v586 = vpop.f32.mrb[0].mxu0
        %v587 = vadd.f32 0.0, %v586
        %v588 = vpop.f32.mrb[0].mxu0
        %589 = vdwg.mxu0
        %590 = vst.msk [vmem:[#allocation3] sm:$0xff] %vm392, %v582
        %591 = vst.msk [vmem:[#allocation3 + $0x8] sm:$0xff] %vm392, %v587
        %v592 = vld [vmem:[#allocation2] sm:$0xff]
        %v593 = vld [vmem:[#allocation2 + $0x8] sm:$0xff]
        %v594 = vmul.f32 %v592, 0.35355338
        %v595 = vmul.f32 %v593, 0.35355338
        %s596 = scalar_lea.vmem [#allocation9], 16
        %v597 = vld [vmem:[%s596] sm:$0xff]
        %v598 = vld [vmem:[%s596 + $0x8] sm:$0xff]
        %601 = vrot.lane.b32.xlu0 %v594, 120
        %v602 = vpop.permute.xlu0 %601
        %603 = vrot.lane.b32.xlu0 %v595, 120
        %v604 = vpop.permute.xlu0 %603
        %607 = vrot.lane.b32.xlu0 %v592, 88
        %v608 = vpop.permute.xlu0 %607
        %609 = vrot.lane.b32.xlu0 %v593, 88
        %v610 = vpop.permute.xlu0 %609
        %v611 = vsel %vm392, %v602, 0
        %v613 = vsel %vm392, %v604, 0
        %v615 = vsel %vm392, %v608, 0
        %v617 = vsel %vm392, %v610, 0
        %619 = vmatprep.subr.mxu0 0.0
        %620 = vmatpush1.xpose.msra.mxu0 %v615
        %621 = vmatprep.subr.mxu0 0.0
        %622 = vmatpush1.xpose.msra.mxu0 %v617
        %623 = vmatprep.subr.mxu0 0.0
        %624 = vmatpush1.xpose.msra.mxu0 0.0
        %625 = vmatprep.subr.mxu0 0.0
        %626 = vmatpush1.xpose.msra.mxu0 0.0
        %627 = vmatprep.subr.mxu0 0.0
        %628 = vmatpush1.xpose.msra.mxu0 0.0
        %629 = vmatprep.subr.mxu0 0.0
        %630 = vmatpush1.xpose.msra.mxu0 0.0
        %631 = vmatprep.subr.mxu0 0.0
        %632 = vmatpush1.xpose.msra.mxu0 0.0
        %633 = vmatprep.subr.mxu0 0.0
        %634 = vmatpush1.xpose.msra.mxu0 0.0
        %635 = vmatprep.subr.mxu0 0.0
        %636 = vmatpush1.xpose.msra.mxu0 0.0
        %637 = vmatprep.subr.mxu0 0.0
        %638 = vmatpush1.xpose.msra.mxu0 0.0
        %639 = vmatprep.subr.mxu0 0.0
        %640 = vmatpush1.xpose.msra.mxu0 0.0
        %641 = vmatprep.subr.mxu0 0.0
        %642 = vmatpush1.xpose.msra.mxu0 0.0
        %643 = vmatprep.subr.mxu0 0.0
        %644 = vmatpush1.xpose.msra.mxu0 0.0
        %645 = vmatprep.subr.mxu0 0.0
        %646 = vmatpush1.xpose.msra.mxu0 0.0
        %647 = vmatprep.subr.mxu0 0.0
        %648 = vmatpush1.xpose.msra.mxu0 0.0
        %649 = vmatprep.subr.mxu0 0.0
        %650 = vmatpush1.xpose.msra.mxu0 0.0
        %651 = vmatprep.subr.mxu0 0.0
        %652 = vmatpush1.xpose.msra.mxu0 0.0
        %653 = vmatprep.subr.mxu0 0.0
        %654 = vmatpush1.xpose.msra.mxu0 0.0
        %655 = vmatprep.subr.mxu0 0.0
        %656 = vmatpush1.xpose.msra.mxu0 0.0
        %657 = vmatprep.subr.mxu0 0.0
        %658 = vmatpush1.xpose.msra.mxu0 0.0
        %659 = vmatprep.subr.mxu0 0.0
        %660 = vmatpush1.xpose.msra.mxu0 0.0
        %661 = vmatprep.subr.mxu0 0.0
        %662 = vmatpush1.xpose.msra.mxu0 0.0
        %663 = vmatprep.subr.mxu0 0.0
        %664 = vmatpush1.xpose.msra.mxu0 0.0
        %665 = vmatprep.subr.mxu0 0.0
        %666 = vmatpush1.xpose.msra.mxu0 0.0
        %667 = vmatprep.subr.mxu0 0.0
        %668 = vmatpush1.xpose.msra.mxu0 0.0
        %669 = vmatprep.subr.mxu0 0.0
        %670 = vmatpush1.xpose.msra.mxu0 0.0
        %671 = vmatprep.subr.mxu0 0.0
        %672 = vmatpush1.xpose.msra.mxu0 0.0
        %673 = vmatprep.subr.mxu0 0.0
        %674 = vmatpush1.xpose.msra.mxu0 0.0
        %675 = vmatprep.subr.mxu0 0.0
        %676 = vmatpush1.xpose.msra.mxu0 0.0
        %677 = vmatprep.subr.mxu0 0.0
        %678 = vmatpush1.xpose.msra.mxu0 0.0
        %679 = vmatprep.subr.mxu0 0.0
        %680 = vmatpush1.xpose.msra.mxu0 0.0
        %681 = vmatprep.subr.mxu0 0.0
        %682 = vmatpush1.xpose.msra.mxu0 0.0
        %683 = vmatprep.mubr.f32.mxu0 0.0
        %684 = vmatmul.mubr.f32.gmra.mrb[0].mxu0 %v611
        %v685 = vpop.f32.mrb[0].mxu0
        %v686 = vadd.f32 %v597, %v685
        %v687 = vpop.f32.mrb[0].mxu0
        %688 = vmatprep.mubr.f32.mxu0 0.0
        %689 = vmatmul.mubr.f32.gmra.mrb[0].mxu0 %v613
        %v690 = vpop.f32.mrb[0].mxu0
        %v691 = vadd.f32 %v598, %v690
        %v692 = vpop.f32.mrb[0].mxu0
        %693 = vdwg.mxu0
        %v694 = vadd.f32 %v686, %v378
        %v695 = vadd.f32 %v691, %v379
        %v696 = vsel %vm480, %v694, -inf
        %697 = vmax.xlane.f32.xlu0 %v696
        %v698 = vpop.xlane.xlu0 %697
        %v699 = vsel %vm480, %v695, -inf
        %700 = vmax.xlane.f32.xlu0 %v699
        %v701 = vpop.xlane.xlu0 %700
        %v702 = vsub.f32 %v694, %v698
        %v703 = vsub.f32 %v695, %v701
        %v704 = vmul.f32 %v702, 1.442695
        %v705 = vpow.pop %v704
        %v706 = vmul.f32 %v703, 1.442695
        %v707 = vpow.pop %v706
        %v708 = vsel %vm480, %v705, 0.0
        %709 = vadd.xlane.f32.xlu0 %v708
        %v710 = vpop.xlane.xlu0 %709
        %v711 = vsel %vm480, %v707, 0.0
        %712 = vadd.xlane.f32.xlu0 %v711
        %v713 = vpop.xlane.xlu0 %712
        %v714 = vrcp.pop %v710
        %v715 = vmul.f32 %v705, %v714
        %v716 = vrcp.pop %v713
        %v717 = vmul.f32 %v707, %v716
        %718 = vrot.lane.b32.xlu0 %v592, 56
        %v719 = vpop.permute.xlu0 %718
        %720 = vrot.lane.b32.xlu0 %v593, 56
        %v721 = vpop.permute.xlu0 %720
        %v725 = vsel %vm480, %v715, 0
        %v728 = vsel %vm480, %v717, 0
        %730 = vmatprep.subr.mxu0 0.0
        %731 = vmatpush1.msra.mxu0 %v719
        %732 = vmatprep.subr.mxu0 0.0
        %733 = vmatpush1.msra.mxu0 %v721
        %734 = vmatprep.subr.mxu0 0.0
        %735 = vmatpush1.msra.mxu0 0.0
        %736 = vmatprep.subr.mxu0 0.0
        %737 = vmatpush1.msra.mxu0 0.0
        %738 = vmatprep.subr.mxu0 0.0
        %739 = vmatpush1.msra.mxu0 0.0
        %740 = vmatprep.subr.mxu0 0.0
        %741 = vmatpush1.msra.mxu0 0.0
        %742 = vmatprep.subr.mxu0 0.0
        %743 = vmatpush1.msra.mxu0 0.0
        %744 = vmatprep.subr.mxu0 0.0
        %745 = vmatpush1.msra.mxu0 0.0
        %746 = vmatprep.subr.mxu0 0.0
        %747 = vmatpush1.msra.mxu0 0.0
        %748 = vmatprep.subr.mxu0 0.0
        %749 = vmatpush1.msra.mxu0 0.0
        %750 = vmatprep.subr.mxu0 0.0
        %751 = vmatpush1.msra.mxu0 0.0
        %752 = vmatprep.subr.mxu0 0.0
        %753 = vmatpush1.msra.mxu0 0.0
        %754 = vmatprep.subr.mxu0 0.0
        %755 = vmatpush1.msra.mxu0 0.0
        %756 = vmatprep.subr.mxu0 0.0
        %757 = vmatpush1.msra.mxu0 0.0
        %758 = vmatprep.subr.mxu0 0.0
        %759 = vmatpush1.msra.mxu0 0.0
        %760 = vmatprep.subr.mxu0 0.0
        %761 = vmatpush1.msra.mxu0 0.0
        %762 = vmatprep.subr.mxu0 0.0
        %763 = vmatpush1.msra.mxu0 0.0
        %764 = vmatprep.subr.mxu0 0.0
        %765 = vmatpush1.msra.mxu0 0.0
        %766 = vmatprep.subr.mxu0 0.0
        %767 = vmatpush1.msra.mxu0 0.0
        %768 = vmatprep.subr.mxu0 0.0
        %769 = vmatpush1.msra.mxu0 0.0
        %770 = vmatprep.subr.mxu0 0.0
        %771 = vmatpush1.msra.mxu0 0.0
        %772 = vmatprep.subr.mxu0 0.0
        %773 = vmatpush1.msra.mxu0 0.0
        %774 = vmatprep.subr.mxu0 0.0
        %775 = vmatpush1.msra.mxu0 0.0
        %776 = vmatprep.subr.mxu0 0.0
        %777 = vmatpush1.msra.mxu0 0.0
        %778 = vmatprep.subr.mxu0 0.0
        %779 = vmatpush1.msra.mxu0 0.0
        %780 = vmatprep.subr.mxu0 0.0
        %781 = vmatpush1.msra.mxu0 0.0
        %782 = vmatprep.subr.mxu0 0.0
        %783 = vmatpush1.msra.mxu0 0.0
        %784 = vmatprep.subr.mxu0 0.0
        %785 = vmatpush1.msra.mxu0 0.0
        %786 = vmatprep.subr.mxu0 0.0
        %787 = vmatpush1.msra.mxu0 0.0
        %788 = vmatprep.subr.mxu0 0.0
        %789 = vmatpush1.msra.mxu0 0.0
        %790 = vmatprep.subr.mxu0 0.0
        %791 = vmatpush1.msra.mxu0 0.0
        %792 = vmatprep.subr.mxu0 0.0
        %793 = vmatpush1.msra.mxu0 0.0
        %794 = vmatprep.mubr.f32.mxu0 0.0
        %795 = vmatmul.mubr.f32.gmra.mrb[0].mxu0 %v725
        %v796 = vpop.f32.mrb[0].mxu0
        %v797 = vadd.f32 0.0, %v796
        %v798 = vpop.f32.mrb[0].mxu0
        %799 = vmatprep.mubr.f32.mxu0 0.0
        %800 = vmatmul.mubr.f32.gmra.mrb[0].mxu0 %v728
        %v801 = vpop.f32.mrb[0].mxu0
        %v802 = vadd.f32 0.0, %v801
        %v803 = vpop.f32.mrb[0].mxu0
        %804 = vdwg.mxu0
        %807 = vrot.lane.b32.xlu0 %v797, 8
        %v808 = vpop.permute.xlu0 %807
        %809 = vrot.lane.b32.xlu0 %v802, 8
        %v810 = vpop.permute.xlu0 %809
        %vm813 = vcmask 130112
        %814 = vst.msk [vmem:[#allocation3] sm:$0xff] %vm813, %v808
        %815 = vst.msk [vmem:[#allocation3 + $0x8] sm:$0xff] %vm813, %v810
        %v816 = vld [vmem:[#allocation2] sm:$0xff]
        %v817 = vld [vmem:[#allocation2 + $0x8] sm:$0xff]
        %v818 = vmul.f32 %v816, 0.35355338
        %v819 = vmul.f32 %v817, 0.35355338
        %s820 = scalar_lea.vmem [#allocation9], 32
        %v821 = vld [vmem:[%s820] sm:$0xff]
        %v822 = vld [vmem:[%s820 + $0x8] sm:$0xff]
        %825 = vrot.lane.b32.xlu0 %v818, 112
        %v826 = vpop.permute.xlu0 %825
        %827 = vrot.lane.b32.xlu0 %v819, 112
        %v828 = vpop.permute.xlu0 %827
        %831 = vrot.lane.b32.xlu0 %v816, 80
        %v832 = vpop.permute.xlu0 %831
        %833 = vrot.lane.b32.xlu0 %v817, 80
        %v834 = vpop.permute.xlu0 %833
        %v835 = vsel %vm392, %v826, 0
        %v837 = vsel %vm392, %v828, 0
        %v839 = vsel %vm392, %v832, 0
        %v841 = vsel %vm392, %v834, 0
        %843 = vmatprep.subr.mxu0 0.0
        %844 = vmatpush1.xpose.msra.mxu0 %v839
        %845 = vmatprep.subr.mxu0 0.0
        %846 = vmatpush1.xpose.msra.mxu0 %v841
        %847 = vmatprep.subr.mxu0 0.0
        %848 = vmatpush1.xpose.msra.mxu0 0.0
        %849 = vmatprep.subr.mxu0 0.0
        %850 = vmatpush1.xpose.msra.mxu0 0.0
        %851 = vmatprep.subr.mxu0 0.0
        %852 = vmatpush1.xpose.msra.mxu0 0.0
        %853 = vmatprep.subr.mxu0 0.0
        %854 = vmatpush1.xpose.msra.mxu0 0.0
        %855 = vmatprep.subr.mxu0 0.0
        %856 = vmatpush1.xpose.msra.mxu0 0.0
        %857 = vmatprep.subr.mxu0 0.0
        %858 = vmatpush1.xpose.msra.mxu0 0.0
        %859 = vmatprep.subr.mxu0 0.0
        %860 = vmatpush1.xpose.msra.mxu0 0.0
        %861 = vmatprep.subr.mxu0 0.0
        %862 = vmatpush1.xpose.msra.mxu0 0.0
        %863 = vmatprep.subr.mxu0 0.0
        %864 = vmatpush1.xpose.msra.mxu0 0.0
        %865 = vmatprep.subr.mxu0 0.0
        %866 = vmatpush1.xpose.msra.mxu0 0.0
        %867 = vmatprep.subr.mxu0 0.0
        %868 = vmatpush1.xpose.msra.mxu0 0.0
        %869 = vmatprep.subr.mxu0 0.0
        %870 = vmatpush1.xpose.msra.mxu0 0.0
        %871 = vmatprep.subr.mxu0 0.0
        %872 = vmatpush1.xpose.msra.mxu0 0.0
        %873 = vmatprep.subr.mxu0 0.0
        %874 = vmatpush1.xpose.msra.mxu0 0.0
        %875 = vmatprep.subr.mxu0 0.0
        %876 = vmatpush1.xpose.msra.mxu0 0.0
        %877 = vmatprep.subr.mxu0 0.0
        %878 = vmatpush1.xpose.msra.mxu0 0.0
        %879 = vmatprep.subr.mxu0 0.0
        %880 = vmatpush1.xpose.msra.mxu0 0.0
        %881 = vmatprep.subr.mxu0 0.0
        %882 = vmatpush1.xpose.msra.mxu0 0.0
        %883 = vmatprep.subr.mxu0 0.0
        %884 = vmatpush1.xpose.msra.mxu0 0.0
        %885 = vmatprep.subr.mxu0 0.0
        %886 = vmatpush1.xpose.msra.mxu0 0.0
        %887 = vmatprep.subr.mxu0 0.0
        %888 = vmatpush1.xpose.msra.mxu0 0.0
        %889 = vmatprep.subr.mxu0 0.0
        %890 = vmatpush1.xpose.msra.mxu0 0.0
        %891 = vmatprep.subr.mxu0 0.0
        %892 = vmatpush1.xpose.msra.mxu0 0.0
        %893 = vmatprep.subr.mxu0 0.0
        %894 = vmatpush1.xpose.msra.mxu0 0.0
        %895 = vmatprep.subr.mxu0 0.0
        %896 = vmatpush1.xpose.msra.mxu0 0.0
        %897 = vmatprep.subr.mxu0 0.0
        %898 = vmatpush1.xpose.msra.mxu0 0.0
        %899 = vmatprep.subr.mxu0 0.0
        %900 = vmatpush1.xpose.msra.mxu0 0.0
        %901 = vmatprep.subr.mxu0 0.0
        %902 = vmatpush1.xpose.msra.mxu0 0.0
        %903 = vmatprep.subr.mxu0 0.0
        %904 = vmatpush1.xpose.msra.mxu0 0.0
        %905 = vmatprep.subr.mxu0 0.0
        %906 = vmatpush1.xpose.msra.mxu0 0.0
        %907 = vmatprep.mubr.f32.mxu0 0.0
        %908 = vmatmul.mubr.f32.gmra.mrb[0].mxu0 %v835
        %v909 = vpop.f32.mrb[0].mxu0
        %v910 = vadd.f32 %v821, %v909
        %v911 = vpop.f32.mrb[0].mxu0
        %912 = vmatprep.mubr.f32.mxu0 0.0
        %913 = vmatmul.mubr.f32.gmra.mrb[0].mxu0 %v837
        %v914 = vpop.f32.mrb[0].mxu0
        %v915 = vadd.f32 %v822, %v914
        %v916 = vpop.f32.mrb[0].mxu0
        %917 = vdwg.mxu0
        %v918 = vadd.f32 %v910, %v378
        %v919 = vadd.f32 %v915, %v379
        %v920 = vsel %vm480, %v918, -inf
        %921 = vmax.xlane.f32.xlu0 %v920
        %v922 = vpop.xlane.xlu0 %921
        %v923 = vsel %vm480, %v919, -inf
        %924 = vmax.xlane.f32.xlu0 %v923
        %v925 = vpop.xlane.xlu0 %924
        %v926 = vsub.f32 %v918, %v922
        %v927 = vsub.f32 %v919, %v925
        %v928 = vmul.f32 %v926, 1.442695
        %v929 = vpow.pop %v928
        %v930 = vmul.f32 %v927, 1.442695
        %v931 = vpow.pop %v930
        %v932 = vsel %vm480, %v929, 0.0
        %933 = vadd.xlane.f32.xlu0 %v932
        %v934 = vpop.xlane.xlu0 %933
        %v935 = vsel %vm480, %v931, 0.0
        %936 = vadd.xlane.f32.xlu0 %v935
        %v937 = vpop.xlane.xlu0 %936
        %v938 = vrcp.pop %v934
        %v939 = vmul.f32 %v929, %v938
        %v940 = vrcp.pop %v937
        %v941 = vmul.f32 %v931, %v940
        %942 = vrot.lane.b32.xlu0 %v816, 48
        %v943 = vpop.permute.xlu0 %942
        %944 = vrot.lane.b32.xlu0 %v817, 48
        %v945 = vpop.permute.xlu0 %944
        %v949 = vsel %vm480, %v939, 0
        %v952 = vsel %vm480, %v941, 0
        %954 = vmatprep.subr.mxu0 0.0
        %955 = vmatpush1.msra.mxu0 %v943
        %956 = vmatprep.subr.mxu0 0.0
        %957 = vmatpush1.msra.mxu0 %v945
        %958 = vmatprep.subr.mxu0 0.0
        %959 = vmatpush1.msra.mxu0 0.0
        %960 = vmatprep.subr.mxu0 0.0
        %961 = vmatpush1.msra.mxu0 0.0
        %962 = vmatprep.subr.mxu0 0.0
        %963 = vmatpush1.msra.mxu0 0.0
        %964 = vmatprep.subr.mxu0 0.0
        %965 = vmatpush1.msra.mxu0 0.0
        %966 = vmatprep.subr.mxu0 0.0
        %967 = vmatpush1.msra.mxu0 0.0
        %968 = vmatprep.subr.mxu0 0.0
        %969 = vmatpush1.msra.mxu0 0.0
        %970 = vmatprep.subr.mxu0 0.0
        %971 = vmatpush1.msra.mxu0 0.0
        %972 = vmatprep.subr.mxu0 0.0
        %973 = vmatpush1.msra.mxu0 0.0
        %974 = vmatprep.subr.mxu0 0.0
        %975 = vmatpush1.msra.mxu0 0.0
        %976 = vmatprep.subr.mxu0 0.0
        %977 = vmatpush1.msra.mxu0 0.0
        %978 = vmatprep.subr.mxu0 0.0
        %979 = vmatpush1.msra.mxu0 0.0
        %980 = vmatprep.subr.mxu0 0.0
        %981 = vmatpush1.msra.mxu0 0.0
        %982 = vmatprep.subr.mxu0 0.0
        %983 = vmatpush1.msra.mxu0 0.0
        %984 = vmatprep.subr.mxu0 0.0
        %985 = vmatpush1.msra.mxu0 0.0
        %986 = vmatprep.subr.mxu0 0.0
        %987 = vmatpush1.msra.mxu0 0.0
        %988 = vmatprep.subr.mxu0 0.0
        %989 = vmatpush1.msra.mxu0 0.0
        %990 = vmatprep.subr.mxu0 0.0
        %991 = vmatpush1.msra.mxu0 0.0
        %992 = vmatprep.subr.mxu0 0.0
        %993 = vmatpush1.msra.mxu0 0.0
        %994 = vmatprep.subr.mxu0 0.0
        %995 = vmatpush1.msra.mxu0 0.0
        %996 = vmatprep.subr.mxu0 0.0
        %997 = vmatpush1.msra.mxu0 0.0
        %998 = vmatprep.subr.mxu0 0.0
        %999 = vmatpush1.msra.mxu0 0.0
        %1000 = vmatprep.subr.mxu0 0.0
        %1001 = vmatpush1.msra.mxu0 0.0
        %1002 = vmatprep.subr.mxu0 0.0
        %1003 = vmatpush1.msra.mxu0 0.0
        %1004 = vmatprep.subr.mxu0 0.0
        %1005 = vmatpush1.msra.mxu0 0.0
        %1006 = vmatprep.subr.mxu0 0.0
        %1007 = vmatpush1.msra.mxu0 0.0
        %1008 = vmatprep.subr.mxu0 0.0
        %1009 = vmatpush1.msra.mxu0 0.0
        %1010 = vmatprep.subr.mxu0 0.0
        %1011 = vmatpush1.msra.mxu0 0.0
        %1012 = vmatprep.subr.mxu0 0.0
        %1013 = vmatpush1.msra.mxu0 0.0
        %1014 = vmatprep.subr.mxu0 0.0
        %1015 = vmatpush1.msra.mxu0 0.0
        %1016 = vmatprep.subr.mxu0 0.0
        %1017 = vmatpush1.msra.mxu0 0.0
        %1018 = vmatprep.mubr.f32.mxu0 0.0
        %1019 = vmatmul.mubr.f32.gmra.mrb[0].mxu0 %v949
        %v1020 = vpop.f32.mrb[0].mxu0
        %v1021 = vadd.f32 0.0, %v1020
        %v1022 = vpop.f32.mrb[0].mxu0
        %1023 = vmatprep.mubr.f32.mxu0 0.0
        %1024 = vmatmul.mubr.f32.gmra.mrb[0].mxu0 %v952
        %v1025 = vpop.f32.mrb[0].mxu0
        %v1026 = vadd.f32 0.0, %v1025
        %v1027 = vpop.f32.mrb[0].mxu0
        %1028 = vdwg.mxu0
        %1031 = vrot.lane.b32.xlu0 %v1021, 16
        %v1032 = vpop.permute.xlu0 %1031
        %1033 = vrot.lane.b32.xlu0 %v1026, 16
        %v1034 = vpop.permute.xlu0 %1033
        %vm1037 = vcmask 195712
        %1038 = vst.msk [vmem:[#allocation3] sm:$0xff] %vm1037, %v1032
        %1039 = vst.msk [vmem:[#allocation3 + $0x8] sm:$0xff] %vm1037, %v1034
        %v1040 = vld [vmem:[#allocation2] sm:$0xff]
        %v1041 = vld [vmem:[#allocation2 + $0x8] sm:$0xff]
        %v1042 = vmul.f32 %v1040, 0.35355338
        %v1043 = vmul.f32 %v1041, 0.35355338
        %s1044 = scalar_lea.vmem [#allocation9], 48
        %v1045 = vld [vmem:[%s1044] sm:$0xff]
        %v1046 = vld [vmem:[%s1044 + $0x8] sm:$0xff]
        %1049 = vrot.lane.b32.xlu0 %v1042, 104
        %v1050 = vpop.permute.xlu0 %1049
        %1051 = vrot.lane.b32.xlu0 %v1043, 104
        %v1052 = vpop.permute.xlu0 %1051
        %1055 = vrot.lane.b32.xlu0 %v1040, 72
        %v1056 = vpop.permute.xlu0 %1055
        %1057 = vrot.lane.b32.xlu0 %v1041, 72
        %v1058 = vpop.permute.xlu0 %1057
        %v1059 = vsel %vm392, %v1050, 0
        %v1061 = vsel %vm392, %v1052, 0
        %v1063 = vsel %vm392, %v1056, 0
        %v1065 = vsel %vm392, %v1058, 0
        %1067 = vmatprep.subr.mxu0 0.0
        %1068 = vmatpush1.xpose.msra.mxu0 %v1063
        %1069 = vmatprep.subr.mxu0 0.0
        %1070 = vmatpush1.xpose.msra.mxu0 %v1065
        %1071 = vmatprep.subr.mxu0 0.0
        %1072 = vmatpush1.xpose.msra.mxu0 0.0
        %1073 = vmatprep.subr.mxu0 0.0
        %1074 = vmatpush1.xpose.msra.mxu0 0.0
        %1075 = vmatprep.subr.mxu0 0.0
        %1076 = vmatpush1.xpose.msra.mxu0 0.0
        %1077 = vmatprep.subr.mxu0 0.0
        %1078 = vmatpush1.xpose.msra.mxu0 0.0
        %1079 = vmatprep.subr.mxu0 0.0
        %1080 = vmatpush1.xpose.msra.mxu0 0.0
        %1081 = vmatprep.subr.mxu0 0.0
        %1082 = vmatpush1.xpose.msra.mxu0 0.0
        %1083 = vmatprep.subr.mxu0 0.0
        %1084 = vmatpush1.xpose.msra.mxu0 0.0
        %1085 = vmatprep.subr.mxu0 0.0
        %1086 = vmatpush1.xpose.msra.mxu0 0.0
        %1087 = vmatprep.subr.mxu0 0.0
        %1088 = vmatpush1.xpose.msra.mxu0 0.0
        %1089 = vmatprep.subr.mxu0 0.0
        %1090 = vmatpush1.xpose.msra.mxu0 0.0
        %1091 = vmatprep.subr.mxu0 0.0
        %1092 = vmatpush1.xpose.msra.mxu0 0.0
        %1093 = vmatprep.subr.mxu0 0.0
        %1094 = vmatpush1.xpose.msra.mxu0 0.0
        %1095 = vmatprep.subr.mxu0 0.0
        %1096 = vmatpush1.xpose.msra.mxu0 0.0
        %1097 = vmatprep.subr.mxu0 0.0
        %1098 = vmatpush1.xpose.msra.mxu0 0.0
        %1099 = vmatprep.subr.mxu0 0.0
        %1100 = vmatpush1.xpose.msra.mxu0 0.0
        %1101 = vmatprep.subr.mxu0 0.0
        %1102 = vmatpush1.xpose.msra.mxu0 0.0
        %1103 = vmatprep.subr.mxu0 0.0
        %1104 = vmatpush1.xpose.msra.mxu0 0.0
        %1105 = vmatprep.subr.mxu0 0.0
        %1106 = vmatpush1.xpose.msra.mxu0 0.0
        %1107 = vmatprep.subr.mxu0 0.0
        %1108 = vmatpush1.xpose.msra.mxu0 0.0
        %1109 = vmatprep.subr.mxu0 0.0
        %1110 = vmatpush1.xpose.msra.mxu0 0.0
        %1111 = vmatprep.subr.mxu0 0.0
        %1112 = vmatpush1.xpose.msra.mxu0 0.0
        %1113 = vmatprep.subr.mxu0 0.0
        %1114 = vmatpush1.xpose.msra.mxu0 0.0
        %1115 = vmatprep.subr.mxu0 0.0
        %1116 = vmatpush1.xpose.msra.mxu0 0.0
        %1117 = vmatprep.subr.mxu0 0.0
        %1118 = vmatpush1.xpose.msra.mxu0 0.0
        %1119 = vmatprep.subr.mxu0 0.0
        %1120 = vmatpush1.xpose.msra.mxu0 0.0
        %1121 = vmatprep.subr.mxu0 0.0
        %1122 = vmatpush1.xpose.msra.mxu0 0.0
        %1123 = vmatprep.subr.mxu0 0.0
        %1124 = vmatpush1.xpose.msra.mxu0 0.0
        %1125 = vmatprep.subr.mxu0 0.0
        %1126 = vmatpush1.xpose.msra.mxu0 0.0
        %1127 = vmatprep.subr.mxu0 0.0
        %1128 = vmatpush1.xpose.msra.mxu0 0.0
        %1129 = vmatprep.subr.mxu0 0.0
        %1130 = vmatpush1.xpose.msra.mxu0 0.0
        %1131 = vmatprep.mubr.f32.mxu0 0.0
        %1132 = vmatmul.mubr.f32.gmra.mrb[0].mxu0 %v1059
        %v1133 = vpop.f32.mrb[0].mxu0
        %v1134 = vadd.f32 %v1045, %v1133
        %v1135 = vpop.f32.mrb[0].mxu0
        %1136 = vmatprep.mubr.f32.mxu0 0.0
        %1137 = vmatmul.mubr.f32.gmra.mrb[0].mxu0 %v1061
        %v1138 = vpop.f32.mrb[0].mxu0
        %v1139 = vadd.f32 %v1046, %v1138
        %v1140 = vpop.f32.mrb[0].mxu0
        %1141 = vdwg.mxu0
        %v1142 = vadd.f32 %v1134, %v378
        %v1143 = vadd.f32 %v1139, %v379
        %v1144 = vsel %vm480, %v1142, -inf
        %1145 = vmax.xlane.f32.xlu0 %v1144
        %v1146 = vpop.xlane.xlu0 %1145
        %v1147 = vsel %vm480, %v1143, -inf
        %1148 = vmax.xlane.f32.xlu0 %v1147
        %v1149 = vpop.xlane.xlu0 %1148
        %v1150 = vsub.f32 %v1142, %v1146
        %v1151 = vsub.f32 %v1143, %v1149
        %v1152 = vmul.f32 %v1150, 1.442695
        %v1153 = vpow.pop %v1152
        %v1154 = vmul.f32 %v1151, 1.442695
        %v1155 = vpow.pop %v1154
        %v1156 = vsel %vm480, %v1153, 0.0
        %1157 = vadd.xlane.f32.xlu0 %v1156
        %v1158 = vpop.xlane.xlu0 %1157
        %v1159 = vsel %vm480, %v1155, 0.0
        %1160 = vadd.xlane.f32.xlu0 %v1159
        %v1161 = vpop.xlane.xlu0 %1160
        %v1162 = vrcp.pop %v1158
        %v1163 = vmul.f32 %v1153, %v1162
        %v1164 = vrcp.pop %v1161
        %v1165 = vmul.f32 %v1155, %v1164
        %1166 = vrot.lane.b32.xlu0 %v1040, 40
        %v1167 = vpop.permute.xlu0 %1166
        %1168 = vrot.lane.b32.xlu0 %v1041, 40
        %v1169 = vpop.permute.xlu0 %1168
        %v1173 = vsel %vm480, %v1163, 0
        %v1176 = vsel %vm480, %v1165, 0
        %1178 = vmatprep.subr.mxu0 0.0
        %1179 = vmatpush1.msra.mxu0 %v1167
        %1180 = vmatprep.subr.mxu0 0.0
        %1181 = vmatpush1.msra.mxu0 %v1169
        %1182 = vmatprep.subr.mxu0 0.0
        %1183 = vmatpush1.msra.mxu0 0.0
        %1184 = vmatprep.subr.mxu0 0.0
        %1185 = vmatpush1.msra.mxu0 0.0
        %1186 = vmatprep.subr.mxu0 0.0
        %1187 = vmatpush1.msra.mxu0 0.0
        %1188 = vmatprep.subr.mxu0 0.0
        %1189 = vmatpush1.msra.mxu0 0.0
        %1190 = vmatprep.subr.mxu0 0.0
        %1191 = vmatpush1.msra.mxu0 0.0
        %1192 = vmatprep.subr.mxu0 0.0
        %1193 = vmatpush1.msra.mxu0 0.0
        %1194 = vmatprep.subr.mxu0 0.0
        %1195 = vmatpush1.msra.mxu0 0.0
        %1196 = vmatprep.subr.mxu0 0.0
        %1197 = vmatpush1.msra.mxu0 0.0
        %1198 = vmatprep.subr.mxu0 0.0
        %1199 = vmatpush1.msra.mxu0 0.0
        %1200 = vmatprep.subr.mxu0 0.0
        %1201 = vmatpush1.msra.mxu0 0.0
        %1202 = vmatprep.subr.mxu0 0.0
        %1203 = vmatpush1.msra.mxu0 0.0
        %1204 = vmatprep.subr.mxu0 0.0
        %1205 = vmatpush1.msra.mxu0 0.0
        %1206 = vmatprep.subr.mxu0 0.0
        %1207 = vmatpush1.msra.mxu0 0.0
        %1208 = vmatprep.subr.mxu0 0.0
        %1209 = vmatpush1.msra.mxu0 0.0
        %1210 = vmatprep.subr.mxu0 0.0
        %1211 = vmatpush1.msra.mxu0 0.0
        %1212 = vmatprep.subr.mxu0 0.0
        %1213 = vmatpush1.msra.mxu0 0.0
        %1214 = vmatprep.subr.mxu0 0.0
        %1215 = vmatpush1.msra.mxu0 0.0
        %1216 = vmatprep.subr.mxu0 0.0
        %1217 = vmatpush1.msra.mxu0 0.0
        %1218 = vmatprep.subr.mxu0 0.0
        %1219 = vmatpush1.msra.mxu0 0.0
        %1220 = vmatprep.subr.mxu0 0.0
        %1221 = vmatpush1.msra.mxu0 0.0
        %1222 = vmatprep.subr.mxu0 0.0
        %1223 = vmatpush1.msra.mxu0 0.0
        %1224 = vmatprep.subr.mxu0 0.0
        %1225 = vmatpush1.msra.mxu0 0.0
        %1226 = vmatprep.subr.mxu0 0.0
        %1227 = vmatpush1.msra.mxu0 0.0
        %1228 = vmatprep.subr.mxu0 0.0
        %1229 = vmatpush1.msra.mxu0 0.0
        %1230 = vmatprep.subr.mxu0 0.0
        %1231 = vmatpush1.msra.mxu0 0.0
        %1232 = vmatprep.subr.mxu0 0.0
        %1233 = vmatpush1.msra.mxu0 0.0
        %1234 = vmatprep.subr.mxu0 0.0
        %1235 = vmatpush1.msra.mxu0 0.0
        %1236 = vmatprep.subr.mxu0 0.0
        %1237 = vmatpush1.msra.mxu0 0.0
        %1238 = vmatprep.subr.mxu0 0.0
        %1239 = vmatpush1.msra.mxu0 0.0
        %1240 = vmatprep.subr.mxu0 0.0
        %1241 = vmatpush1.msra.mxu0 0.0
        %1242 = vmatprep.mubr.f32.mxu0 0.0
        %1243 = vmatmul.mubr.f32.gmra.mrb[0].mxu0 %v1173
        %v1244 = vpop.f32.mrb[0].mxu0
        %v1245 = vadd.f32 0.0, %v1244
        %v1246 = vpop.f32.mrb[0].mxu0
        %1247 = vmatprep.mubr.f32.mxu0 0.0
        %1248 = vmatmul.mubr.f32.gmra.mrb[0].mxu0 %v1176
        %v1249 = vpop.f32.mrb[0].mxu0
        %v1250 = vadd.f32 0.0, %v1249
        %v1251 = vpop.f32.mrb[0].mxu0
        %1252 = vdwg.mxu0
        %1255 = vrot.lane.b32.xlu0 %v1245, 24
        %v1256 = vpop.permute.xlu0 %1255
        %1257 = vrot.lane.b32.xlu0 %v1250, 24
        %v1258 = vpop.permute.xlu0 %1257
        %vm1261 = vcmask 261312
        %1262 = vst.msk [vmem:[#allocation3] sm:$0xff] %vm1261, %v1256
        %1263 = vst.msk [vmem:[#allocation3 + $0x8] sm:$0xff] %vm1261, %v1258
        %v1264 = vld [vmem:[#allocation3] sm:$0xff]
        %v1265 = vld [vmem:[#allocation3 + $0x8] sm:$0xff]
        %1266 = vst.msk [vmem:[%s284] sm:$0xff] %vm291, %v1264
        %1267 = vst.msk [vmem:[%s284 + $0x8] sm:$0xff] %vm291, %v1265
        %s1268 = sand.u32 %s127, 1
        %s1269 = scalar_lea.sflag [#allocation6], %s1268
        %s1270 = sand.u32 %s127, 1
        %s1271 = smul.addr %s1270, 16
        %s1272 = scalar_lea.vmem [#allocation12], %s1271
        // Predicated region
        $region53: #{tpu_custom_call.1} parent=35 // pred_check
          %p1273 = pneg %p137
        $region54: #{tpu_custom_call.1} parent=35 // pred_check_branch
          %1275 = sbr.rel (%p1273) target = $region56
        $region55: #{tpu_custom_call.1} parent=35 // pred_region
          %s1277 = ssub.s32 256, 256
          %1278 = vsyncadd %s1269, %s1277
          %s1279 = smul.addr %s25, 2
          %s1280 = smul.addr %s1279, 128
          %s1281 = scalar_lea.hbm %s4, %s1280
          %s1282 = sshll.u32 %s1272, 4
          %s1283 = int_to_ptr.vmem [resolvable:$true] %s1282
          %1288 = dma.vmem_to_hbm [thread:$0]  %s1283, 256, %s1281, %s1269, 128, 128, 8
        $region56: #{tpu_custom_call.1} parent=35 // pred_fallthru
          _
      $region36: #{tpu_custom_call.1} parent=5 // pred_fallthru
        _
      %p1289 = scmp.le.s32.totalorder 2, %s20
      // Predicated region
      $region57: #{tpu_custom_call.1} parent=5 // pred_check
        %p1290 = pneg %p1289
      $region58: #{tpu_custom_call.1} parent=5 // pred_check_branch
        %1292 = sbr.rel (%p1290) target = $region60
      $region59: #{tpu_custom_call.1} parent=5 // pred_region
        %s1293 = ssub.s32 %s20, 2
        // Predicated region
        $region61: #{tpu_custom_call.1} parent=59 // pred_check
          %p1294 = pneg %p143
        $region62: #{tpu_custom_call.1} parent=59 // pred_check_branch
          %1296 = sbr.rel (%p1294) target = $region64
        $region63: #{tpu_custom_call.1} parent=59 // pred_region
          %s1297 = sand.u32 %s128, 1
          %s1298 = scalar_lea.sflag [#allocation6], %s1297
          %s1299 = sand.u32 %s128, 1
          %s1300 = smul.addr %s1299, 16
          %s1301 = scalar_lea.vmem [#allocation12], %s1300
          %1302 = dma.done %s1298, 256
        $region64: #{tpu_custom_call.1} parent=59 // pred_fallthru
          _
      $region60: #{tpu_custom_call.1} parent=5 // pred_fallthru
        _
    $region6: #{tpu_custom_call.1} parent=1 // loop_footer
      %s24 = sadd.s32 1, %s20
    $region7: #{tpu_custom_call.1} parent=1 // loop_footer_branch
      %19 = sbr.rel target = $region3
    $region8: #{tpu_custom_call.1} parent=1 // loop_exit
      _
    %1303 = vsyncpa [#allocation5], 1
    %s1304 = scalar_lea.sflag [#allocation5], 1
    %1305 = vsyncpa %s1304, 1
    %1306 = vsyncpa [#allocation8], 1
    %1307 = vsyncpa [#allocation11], 1
    %s1308 = scalar_lea.sflag [#allocation11], 1
    %1309 = vsyncpa %s1308, 1
    %1310 = vsyncpa [#allocation6], 1
    %s1311 = scalar_lea.sflag [#allocation6], 1
    %1312 = vsyncpa %s1311, 1

</llo_original>
